<compile_context>
chip_gen: v7x
topology: tpu7x:2x2x1
jax: 0.10.0
libtpu: 0.0.40
codegen_flags: <defaults>
</compile_context>

<pallas_src>
import functools

import jax
import jax.numpy as jnp
from jax import lax
from jax.experimental import pallas as pl
from jax.experimental.pallas import tpu as pltpu


def _full_spec(shape):
    nd = len(shape)
    return pl.BlockSpec(shape, lambda i, _nd=nd: (0,) * _nd)


# ------------------------- fused BiLSTM + hidden2tag + CRF kernel -------------------------
def _make_bilstm_crf_kernel(S, B, E, H2, T, start_id):
    SB = S * B
    TB = T * B
    D = 2 * H2           # fused hidden width  [h_f | h_b]
    G = 8 * H2           # fused gate width    [i_f,i_b,f_f,f_b,o_f,o_b,g_f,g_b]

    # row offsets inside the packed tag-width (T-lane) parameter slab
    OFF_WOUT = 0                    # [2*H2, T]  stacked hidden2tag weight
    OFF_TRANSREP = OFF_WOUT + D     # [T*B, T]   trans row r = transitions[r // B, :]
    OFF_EMITSEL = OFF_TRANSREP + TB # [T*B, T]   one-hot(r // B)
    OFF_TRANS = OFF_EMITSEL + TB    # [T, T]     transitions
    OFF_BOUT = OFF_TRANS + T        # [1, T]     hidden2tag bias
    OFF_TEND = OFF_BOUT + 1         # [1, T]     transitions[:, end_id] as a row
    OFF_PREV = OFF_TEND + 1         # [S*B, T]   one-hot of previous gold tag (START prepended)
    OFF_CUR = OFF_PREV + SB         # [S*B, T]   one-hot of current gold tag

    def kernel(x_ref, lstm_ref, state_ref, tag_ref, loss_ref, hs_ref):
        # ------------------------------ unpack packed params ------------------------------
        wih = lstm_ref[0:2 * E, :]                           # [2E, 8H2]  block-diag over directions
        whh = lstm_ref[2 * E:2 * E + D, :]                   # [2H2, 8H2] block-diag over directions
        bg = lstm_ref[2 * E + D:2 * E + D + 1, :]            # [1, 8H2]

        h = state_ref[0:B, :]                                # [B, 2H2]  = [h0_f | h0_b]
        c = state_ref[B:2 * B, :]                            # [B, 2H2]  = [c0_f | c0_b]

        wout = tag_ref[OFF_WOUT:OFF_WOUT + D, :]             # [2H2, T]
        trans_rep = tag_ref[OFF_TRANSREP:OFF_TRANSREP + TB, :]
        emit_sel = tag_ref[OFF_EMITSEL:OFF_EMITSEL + TB, :]
        trans = tag_ref[OFF_TRANS:OFF_TRANS + T, :]
        bout = tag_ref[OFF_BOUT:OFF_BOUT + 1, :]
        trans_end = tag_ref[OFF_TEND:OFF_TEND + 1, :]
        prev_oh = tag_ref[OFF_PREV:OFF_PREV + SB, :]
        cur_oh = tag_ref[OFF_CUR:OFF_CUR + SB, :]

        # --------------------- fused bidirectional LSTM (one recurrence) ---------------------
        # x_ref rows are [emb_t | emb_{S-1-t}] so one matmul yields both directions' gate inputs.
        xproj = jnp.dot(x_ref[...], wih, preferred_element_type=jnp.float32) + bg   # [S*B, 8H2]

        # NOTE: S is tiny; Python-unrolled.  If S grows, convert to lax.fori_loop(..., unroll=True).
        for t in range(S):
            g_all = (xproj[t * B:(t + 1) * B, :]
                     + jnp.dot(h, whh, preferred_element_type=jnp.float32))         # [B, 8H2]
            sg = jax.nn.sigmoid(g_all[:, :6 * H2])           # contiguous i|f|o slab (both dirs)
            gg = jnp.tanh(g_all[:, 6 * H2:])                 # g gate (both dirs)
            i_g = sg[:, 0:D]
            f_g = sg[:, D:2 * D]
            o_g = sg[:, 2 * D:3 * D]
            c = f_g * c + i_g * gg
            h = o_g * jnp.tanh(c)
            # forward hidden belongs to time t, backward hidden to time S-1-t
            hs_ref[t * B:(t + 1) * B, 0:H2] = h[:, 0:H2]
            hs_ref[(S - 1 - t) * B:(S - t) * B, H2:D] = h[:, H2:D]

        # single hidden2tag projection over the whole sequence
        feats = jnp.dot(hs_ref[...], wout, preferred_element_type=jnp.float32) + bout   # [S*B, T]

        # ------------------------ numerator: gold path score, fully batched ------------------------
        trans_rows = jnp.dot(prev_oh, trans, preferred_element_type=jnp.float32)        # [S*B, T]
        num = jnp.sum(jnp.sum(cur_oh * (trans_rows + feats), axis=1, keepdims=True),
                      axis=0, keepdims=True)                                             # [1, 1]
        num = num + jnp.sum(jnp.sum(cur_oh[(S - 1) * B:, :] * trans_end, axis=1, keepdims=True),
                            axis=0, keepdims=True)

        # --------------------- denominator: CRF forward algorithm (vectorized) ---------------------
        # Row r = t_next * B + b of the [T*B, T] block holds the reference's next_tag_var for
        # (next tag t_next, batch b).  The flat order r is exactly torch.cat(alphas_t)'s order, so the
        # cat(...).view(B, T) reshuffle is one concat + one small transpose.
        col_id = lax.broadcasted_iota(jnp.int32, (B, T), 1)
        fv = jnp.where(col_id == start_id, 0.0, -10000.0).astype(jnp.float32)           # [B, T]
        for s in range(S):
            feat_s = feats[s * B:(s + 1) * B, :]                                         # [B, T]
            f_rep = jnp.concatenate([feat_s] * T, axis=0)                                # [T*B, T]
            emit = jnp.sum(f_rep * emit_sel, axis=1, keepdims=True)                      # [T*B, 1]
            fv_rep = jnp.concatenate([fv] * T, axis=0)                                   # [T*B, T]
            nv = fv_rep + trans_rep + emit                                               # [T*B, T]
            m = jnp.max(nv, axis=1, keepdims=True)
            a = m + jnp.log(jnp.sum(jnp.exp(nv - m), axis=1, keepdims=True))             # [T*B, 1]
            # cat(alphas_t).view(B, T):  fv[b, t] = a[b*T + t]
            a_tb = jnp.concatenate([a[b * T:(b + 1) * T, :] for b in range(B)], axis=1)  # [T, B]
            fv = jnp.transpose(a_tb)                                                     # [B, T]

        end_var = fv + trans_end
        m = jnp.max(end_var, axis=1, keepdims=True)
        alpha = m + jnp.log(jnp.sum(jnp.exp(end_var - m), axis=1, keepdims=True))        # [B, 1]

        loss_ref[...] = (num - jnp.sum(alpha, axis=0, keepdims=True)) / B

    return kernel


# --------------------------------- full forward (wrapper) ------------------------------------
def bilstm_crf_forward(sentence, tags, p, start_id, end_id):
    B, S = sentence.shape
    T = p["transitions"].shape[0]
    E = p["emb"].shape[1]
    H2 = p["wih_f"].shape[2]
    f32 = jnp.float32

    # ---- embedding lookup, sequence-major (row = t*B + b), plus time-reversed copy for bwd dir ----
    embeds = p["emb"][sentence]                                   # [B, S, E]
    emb_t = jnp.transpose(embeds, (1, 0, 2))                      # [S, B, E]
    emb_2d = emb_t.reshape(S * B, E)
    emb_rev_2d = emb_t[::-1].reshape(S * B, E)
    x = jnp.concatenate([emb_2d, emb_rev_2d], axis=1).astype(f32)  # [S*B, 2E]

    # ---- fuse per-gate, per-direction LSTM weights into block-diagonal stacks ----
    # column blocks (width H2) in order [i_f, i_b, f_f, f_b, o_f, o_b, g_f, g_b]
    zE = jnp.zeros((E, H2), f32)
    zH = jnp.zeros((H2, H2), f32)
    wih_cols, whh_cols, b_cols = [], [], []
    for g in (0, 1, 3, 2):            # PyTorch gate order (i, f, g, o) -> pick i, f, o, g
        wih_cols += [jnp.concatenate([p["wih_f"][g], zE], axis=0),
                     jnp.concatenate([zE, p["wih_b"][g]], axis=0)]
        whh_cols += [jnp.concatenate([p["whh_f"][g], zH], axis=0),
                     jnp.concatenate([zH, p["whh_b"][g]], axis=0)]
        b_cols += [p["b_f"][g], p["b_b"][g]]
    wih_blk = jnp.concatenate(wih_cols, axis=1)                    # [2E, 8H2]
    whh_blk = jnp.concatenate(whh_cols, axis=1)                    # [2H2, 8H2]
    b_blk = jnp.concatenate(b_cols, axis=1)                        # [1, 8H2]
    lstm_p = jnp.concatenate([wih_blk, whh_blk, b_blk], axis=0).astype(f32)   # [2E+2H2+1, 8H2]

    # ---- fused initial state [h_f | h_b], [c_f | c_b] ----
    state0 = jnp.concatenate(
        [jnp.concatenate([p["h0"][0], p["h0"][1]], axis=1),
         jnp.concatenate([p["c0"][0], p["c0"][1]], axis=1)], axis=0).astype(f32)          # [2B, 2H2]

    # ---- tag-width (T-lane) packed params: projection, CRF tables, gold-tag one-hots ----
    wout_cat = jnp.concatenate([p["wout_f"], p["wout_b"]], axis=0)                         # [2H2, T]
    trans = p["transitions"]
    trans_rep = jnp.repeat(trans, B, axis=0)                                               # [T*B, T]
    emit_sel = jax.nn.one_hot(jnp.arange(T * B) // B, T, dtype=f32)                        # [T*B, T]
    trans_end = trans[:, end_id].reshape(1, T)
    tags_ext = jnp.concatenate([jnp.full((B, 1), start_id, dtype=tags.dtype), tags], axis=1)
    prev_oh = jnp.transpose(jax.nn.one_hot(tags_ext[:, :-1], T, dtype=f32), (1, 0, 2)).reshape(S * B, T)
    cur_oh = jnp.transpose(jax.nn.one_hot(tags_ext[:, 1:], T, dtype=f32), (1, 0, 2)).reshape(S * B, T)
    tag_p = jnp.concatenate([wout_cat, trans_rep, emit_sel, trans,
                             p["bout"], trans_end, prev_oh, cur_oh], axis=0).astype(f32)   # [.., T]

    args = (x, lstm_p, state0, tag_p)
    kernel = _make_bilstm_crf_kernel(S, B, E, H2, T, start_id)
    out = pl.pallas_call(
        kernel,
        out_shape=jax.ShapeDtypeStruct((1, 1), jnp.float32),
        grid=(1,),
        in_specs=[_full_spec(a.shape) for a in args],
        out_specs=_full_spec((1, 1)),
        scratch_shapes=[pltpu.VMEM((S * B, 2 * H2), jnp.float32)],
        compiler_params=pltpu.CompilerParams(dimension_semantics=("arbitrary",)),
    )(*args)
    return out[0, 0]


# ------------------------- pure-JAX reference (direct port of the module) ------------------------
def _reference_forward(sentence, tags, p, start_id, end_id):
    B, S = sentence.shape
    T = p["transitions"].shape[0]
    embeds = p["emb"][sentence]

    def cell(x, h, c, wih, whh, b):
        def gate(k):
            return x @ wih[k] + h @ whh[k] + b[k]
        i = jax.nn.sigmoid(gate(0)); f = jax.nn.sigmoid(gate(1))
        g = jnp.tanh(gate(2)); o = jax.nn.sigmoid(gate(3))
        c = f * c + i * g
        return o * jnp.tanh(c), c

    hf, cf = p["h0"][0], p["c0"][0]
    hb, cb = p["h0"][1], p["c0"][1]
    outs_f, outs_b = [], [None] * S
    for t in range(S):
        hf, cf = cell(embeds[:, t], hf, cf, p["wih_f"], p["whh_f"], p["b_f"])
        outs_f.append(hf)
    for t in range(S - 1, -1, -1):
        hb, cb = cell(embeds[:, t], hb, cb, p["wih_b"], p["whh_b"], p["b_b"])
        outs_b[t] = hb
    lstm_out = jnp.stack(
        [jnp.concatenate([outs_f[t], outs_b[t]], axis=1) for t in range(S)], axis=1)
    wout = jnp.concatenate([p["wout_f"], p["wout_b"]], axis=0)
    feats = lstm_out @ wout + p["bout"]                # [B, S, T]
    trans = p["transitions"]

    tags_ext = jnp.concatenate(
        [jnp.full((B, 1), start_id, dtype=tags.dtype), tags], axis=1)
    scores = jnp.zeros((B,), jnp.float32)
    for idx in range(S):
        prev, cur = tags_ext[:, idx], tags_ext[:, idx + 1]
        scores = scores + trans[prev, cur] + feats[jnp.arange(B), idx, cur]
    scores = scores + trans[tags_ext[:, -1], end_id]

    fv = jnp.full((B, T), -10000.0).at[:, start_id].set(0.0)
    for s in range(S):
        feat = feats[:, s, :]
        alphas = []
        for t in range(T):
            nv = fv + trans[t][None, :] + feat[:, t][:, None]
            m = jnp.max(nv)
            alphas.append(m + jnp.log(jnp.sum(jnp.exp(nv - m), axis=1)))
        fv = jnp.concatenate(alphas).reshape(B, T)
    end_var = fv + trans[:, end_id][None, :]
    m = jnp.max(end_var)
    alpha = m + jnp.log(jnp.sum(jnp.exp(end_var - m), axis=1))
    return jnp.mean(scores - alpha)


# ------------------------------- deterministic params ------------------------------
def init_params(key, vocab_size, embed_dim, hidden_dim, tag_size, batch_size):
    H2 = hidden_dim // 2
    ks = jax.random.split(key, 12)
    n = lambda k, shp, s=0.1: (s * jax.random.normal(k, shp)).astype(jnp.float32)
    return {
        "emb": n(ks[0], (vocab_size, embed_dim), 0.5),
        "wih_f": n(ks[1], (4, embed_dim, H2)),
        "whh_f": n(ks[2], (4, H2, H2)),
        "b_f": n(ks[3], (4, 1, H2)),
        "wih_b": n(ks[4], (4, embed_dim, H2)),
        "whh_b": n(ks[5], (4, H2, H2)),
        "b_b": n(ks[6], (4, 1, H2)),
        "wout_f": n(ks[7], (H2, tag_size)),
        "wout_b": n(ks[8], (H2, tag_size)),
        "bout": n(ks[9], (1, tag_size)),
        "h0": n(ks[10], (2, batch_size, H2)),
        "c0": n(ks[11], (2, batch_size, H2)),
    }


if __name__ == "__main__":
    B, S, V, E, HID = 2, 8, 20, 8, 32
    T = 6                       # 4 real tags + START(4) + END(5)
    START_ID, END_ID = 4, 5

    key = jax.random.PRNGKey(0)
    kp, kt, ksent, ktag = jax.random.split(key, 4)
    params = init_params(kp, V, E, HID, T, B)
    transitions = (0.1 * jax.random.normal(kt, (T, T))).astype(jnp.float32)
    transitions = transitions.at[:, START_ID].set(-10000.0)
    transitions = transitions.at[END_ID, :].set(-10000.0)
    params["transitions"] = transitions

    sentence = jax.random.randint(ksent, (B, S), 0, V, dtype=jnp.int32)
    tags = jax.random.randint(ktag, (B, S), 0, 4, dtype=jnp.int32)

    fwd = jax.jit(functools.partial(bilstm_crf_forward, start_id=START_ID, end_id=END_ID))
    loss = jax.block_until_ready(fwd(sentence, tags, params))

    with jax.default_matmul_precision("highest"):
        ref = jax.block_until_ready(_reference_forward(sentence, tags, params, START_ID, END_ID))

    assert bool(jnp.isfinite(loss)), "non-finite loss"
    assert abs(float(loss) - float(ref)) < 5e-2, (float(loss), float(ref))
    print("KERNEL_OK")
</pallas_src>

<mosaic_0001>
module attributes {stable_mosaic.version = 11 : i64} {
  func.func @kernel(%arg0: i32, %arg1: memref<16x16xf32, #tpu.memory_space<vmem>>, %arg2: memref<49x128xf32, #tpu.memory_space<vmem>>, %arg3: memref<4x32xf32, #tpu.memory_space<vmem>>, %arg4: memref<96x6xf32, #tpu.memory_space<vmem>>, %arg5: memref<1x1xf32, #tpu.memory_space<vmem>>, %arg6: memref<16x32xf32, #tpu.memory_space<vmem>>) attributes {dimension_semantics = [#tpu.dimension_semantics<arbitrary>], iteration_bounds = array<i64: 1>, scalar_prefetch = 0 : i64, scratch_operands = 1 : i64, tpu.core_type = #tpu.core_type<tc>, window_params = [{pipeline_mode = #tpu.pipeline_mode<synchronous>, transform_indices = @transform_0, window_bounds = array<i64: 16, 16>}, {pipeline_mode = #tpu.pipeline_mode<synchronous>, transform_indices = @transform_1, window_bounds = array<i64: 49, 128>}, {pipeline_mode = #tpu.pipeline_mode<synchronous>, transform_indices = @transform_2, window_bounds = array<i64: 4, 32>}, {pipeline_mode = #tpu.pipeline_mode<synchronous>, transform_indices = @transform_3, window_bounds = array<i64: 96, 6>}, {pipeline_mode = #tpu.pipeline_mode<synchronous>, transform_indices = @transform_4, window_bounds = array<i64: 1, 1>}]} {
    %c0 = arith.constant 0 : index
    %c0_0 = arith.constant 0 : index
    %0 = vector.load %arg2[%c0, %c0_0] : memref<49x128xf32, #tpu.memory_space<vmem>>, vector<16x128xf32>
    %c16 = arith.constant 16 : index
    %c0_1 = arith.constant 0 : index
    %1 = vector.load %arg2[%c16, %c0_1] : memref<49x128xf32, #tpu.memory_space<vmem>>, vector<32x128xf32>
    %c48 = arith.constant 48 : index
    %c0_2 = arith.constant 0 : index
    %2 = vector.load %arg2[%c48, %c0_2] : memref<49x128xf32, #tpu.memory_space<vmem>>, vector<1x128xf32>
    %c0_3 = arith.constant 0 : index
    %c0_4 = arith.constant 0 : index
    %3 = vector.load %arg3[%c0_3, %c0_4] : memref<4x32xf32, #tpu.memory_space<vmem>>, vector<2x32xf32>
    %c2 = arith.constant 2 : index
    %c0_5 = arith.constant 0 : index
    %4 = vector.load %arg3[%c2, %c0_5] : memref<4x32xf32, #tpu.memory_space<vmem>>, vector<2x32xf32>
    %c0_6 = arith.constant 0 : index
    %c0_7 = arith.constant 0 : index
    %5 = vector.load %arg4[%c0_6, %c0_7] : memref<96x6xf32, #tpu.memory_space<vmem>>, vector<32x6xf32>
    %c32 = arith.constant 32 : index
    %c0_8 = arith.constant 0 : index
    %6 = vector.load %arg4[%c32, %c0_8] : memref<96x6xf32, #tpu.memory_space<vmem>>, vector<12x6xf32>
    %c44 = arith.constant 44 : index
    %c0_9 = arith.constant 0 : index
    %7 = vector.load %arg4[%c44, %c0_9] : memref<96x6xf32, #tpu.memory_space<vmem>>, vector<12x6xf32>
    %c56 = arith.constant 56 : index
    %c0_10 = arith.constant 0 : index
    %8 = vector.load %arg4[%c56, %c0_10] : memref<96x6xf32, #tpu.memory_space<vmem>>, vector<6x6xf32>
    %c62 = arith.constant 62 : index
    %c0_11 = arith.constant 0 : index
    %9 = vector.load %arg4[%c62, %c0_11] : memref<96x6xf32, #tpu.memory_space<vmem>>, vector<1x6xf32>
    %c63 = arith.constant 63 : index
    %c0_12 = arith.constant 0 : index
    %10 = vector.load %arg4[%c63, %c0_12] : memref<96x6xf32, #tpu.memory_space<vmem>>, vector<1x6xf32>
    %c64 = arith.constant 64 : index
    %c0_13 = arith.constant 0 : index
    %11 = vector.load %arg4[%c64, %c0_13] : memref<96x6xf32, #tpu.memory_space<vmem>>, vector<16x6xf32>
    %c80 = arith.constant 80 : index
    %c0_14 = arith.constant 0 : index
    %12 = vector.load %arg4[%c80, %c0_14] : memref<96x6xf32, #tpu.memory_space<vmem>>, vector<16x6xf32>
    %c0_15 = arith.constant 0 : index
    %c0_16 = arith.constant 0 : index
    %13 = vector.load %arg1[%c0_15, %c0_16] : memref<16x16xf32, #tpu.memory_space<vmem>>, vector<16x16xf32>
    %cst = arith.constant dense<0.000000e+00> : vector<16x128xf32>
    %14 = tpu.matmul %13, %0, %cst {dimension_numbers = #tpu.dot_dimension_numbers<[1], [0], [0], [1], [0, 0, 1, 1], [], []>} : vector<16x16xf32>, vector<16x128xf32>, vector<16x128xf32> -> vector<16x128xf32>
    %15 = vector.broadcast %2 : vector<1x128xf32> to vector<16x128xf32>
    %16 = arith.addf %14, %15 : vector<16x128xf32>
    %17 = vector.extract_strided_slice %16 {offsets = [0, 0], sizes = [2, 128], strides = [1, 1]} : vector<16x128xf32> to vector<2x128xf32>
    %cst_17 = arith.constant dense<0.000000e+00> : vector<2x128xf32>
    %18 = tpu.matmul %3, %1, %cst_17 {dimension_numbers = #tpu.dot_dimension_numbers<[1], [0], [0], [1], [0, 0, 1, 1], [], []>} : vector<2x32xf32>, vector<32x128xf32>, vector<2x128xf32> -> vector<2x128xf32>
    %19 = arith.addf %17, %18 : vector<2x128xf32>
    %20 = vector.extract_strided_slice %19 {offsets = [0, 0], sizes = [2, 96], strides = [1, 1]} : vector<2x128xf32> to vector<2x96xf32>
    %21 = arith.negf %20 : vector<2x96xf32>
    %22 = math.exp %21 : vector<2x96xf32>
    %cst_18 = arith.constant 1.000000e+00 : f32
    %23 = vector.broadcast %cst_18 : f32 to vector<2x96xf32>
    %24 = arith.addf %23, %22 : vector<2x96xf32>
    %25 = arith.divf %23, %24 : vector<2x96xf32>
    %26 = vector.extract_strided_slice %19 {offsets = [0, 96], sizes = [2, 32], strides = [1, 1]} : vector<2x128xf32> to vector<2x32xf32>
    %27 = math.tanh %26 : vector<2x32xf32>
    %28 = vector.extract_strided_slice %25 {offsets = [0, 0], sizes = [2, 32], strides = [1, 1]} : vector<2x96xf32> to vector<2x32xf32>
    %29 = vector.extract_strided_slice %25 {offsets = [0, 32], sizes = [2, 32], strides = [1, 1]} : vector<2x96xf32> to vector<2x32xf32>
    %30 = vector.extract_strided_slice %25 {offsets = [0, 64], sizes = [2, 32], strides = [1, 1]} : vector<2x96xf32> to vector<2x32xf32>
    %31 = arith.mulf %29, %4 : vector<2x32xf32>
    %32 = arith.mulf %28, %27 : vector<2x32xf32>
    %33 = arith.addf %31, %32 : vector<2x32xf32>
    %34 = math.tanh %33 : vector<2x32xf32>
    %35 = arith.mulf %30, %34 : vector<2x32xf32>
    %36 = vector.extract_strided_slice %35 {offsets = [0, 0], sizes = [2, 16], strides = [1, 1]} : vector<2x32xf32> to vector<2x16xf32>
    %c0_19 = arith.constant 0 : index
    %c0_20 = arith.constant 0 : index
    %37 = vector.load %arg6[%c0_19, %c0_20] : memref<16x32xf32, #tpu.memory_space<vmem>>, vector<2x16xf32>
    tpu.vector_store %arg6[%c0_19, %c0_20], %36 {strides = array<i32>} : memref<16x32xf32, #tpu.memory_space<vmem>>, vector<2x16xf32>,
    %38 = vector.extract_strided_slice %35 {offsets = [0, 16], sizes = [2, 16], strides = [1, 1]} : vector<2x32xf32> to vector<2x16xf32>
    %c14 = arith.constant 14 : index
    %c16_21 = arith.constant 16 : index
    %39 = vector.load %arg6[%c14, %c16_21] : memref<16x32xf32, #tpu.memory_space<vmem>>, vector<2x16xf32>
    tpu.vector_store %arg6[%c14, %c16_21], %38 {strides = array<i32>} : memref<16x32xf32, #tpu.memory_space<vmem>>, vector<2x16xf32>,
    %40 = vector.extract_strided_slice %16 {offsets = [2, 0], sizes = [2, 128], strides = [1, 1]} : vector<16x128xf32> to vector<2x128xf32>
    %cst_22 = arith.constant dense<0.000000e+00> : vector<2x128xf32>
    %41 = tpu.matmul %35, %1, %cst_22 {dimension_numbers = #tpu.dot_dimension_numbers<[1], [0], [0], [1], [0, 0, 1, 1], [], []>} : vector<2x32xf32>, vector<32x128xf32>, vector<2x128xf32> -> vector<2x128xf32>
    %42 = arith.addf %40, %41 : vector<2x128xf32>
    %43 = vector.extract_strided_slice %42 {offsets = [0, 0], sizes = [2, 96], strides = [1, 1]} : vector<2x128xf32> to vector<2x96xf32>
    %44 = arith.negf %43 : vector<2x96xf32>
    %45 = math.exp %44 : vector<2x96xf32>
    %cst_23 = arith.constant 1.000000e+00 : f32
    %46 = vector.broadcast %cst_23 : f32 to vector<2x96xf32>
    %47 = arith.addf %46, %45 : vector<2x96xf32>
    %48 = arith.divf %46, %47 : vector<2x96xf32>
    %49 = vector.extract_strided_slice %42 {offsets = [0, 96], sizes = [2, 32], strides = [1, 1]} : vector<2x128xf32> to vector<2x32xf32>
    %50 = math.tanh %49 : vector<2x32xf32>
    %51 = vector.extract_strided_slice %48 {offsets = [0, 0], sizes = [2, 32], strides = [1, 1]} : vector<2x96xf32> to vector<2x32xf32>
    %52 = vector.extract_strided_slice %48 {offsets = [0, 32], sizes = [2, 32], strides = [1, 1]} : vector<2x96xf32> to vector<2x32xf32>
    %53 = vector.extract_strided_slice %48 {offsets = [0, 64], sizes = [2, 32], strides = [1, 1]} : vector<2x96xf32> to vector<2x32xf32>
    %54 = arith.mulf %52, %33 : vector<2x32xf32>
    %55 = arith.mulf %51, %50 : vector<2x32xf32>
    %56 = arith.addf %54, %55 : vector<2x32xf32>
    %57 = math.tanh %56 : vector<2x32xf32>
    %58 = arith.mulf %53, %57 : vector<2x32xf32>
    %59 = vector.extract_strided_slice %58 {offsets = [0, 0], sizes = [2, 16], strides = [1, 1]} : vector<2x32xf32> to vector<2x16xf32>
    %c2_24 = arith.constant 2 : index
    %c0_25 = arith.constant 0 : index
    %60 = vector.load %arg6[%c2_24, %c0_25] : memref<16x32xf32, #tpu.memory_space<vmem>>, vector<2x16xf32>
    tpu.vector_store %arg6[%c2_24, %c0_25], %59 {strides = array<i32>} : memref<16x32xf32, #tpu.memory_space<vmem>>, vector<2x16xf32>,
    %61 = vector.extract_strided_slice %58 {offsets = [0, 16], sizes = [2, 16], strides = [1, 1]} : vector<2x32xf32> to vector<2x16xf32>
    %c12 = arith.constant 12 : index
    %c16_26 = arith.constant 16 : index
    %62 = vector.load %arg6[%c12, %c16_26] : memref<16x32xf32, #tpu.memory_space<vmem>>, vector<2x16xf32>
    tpu.vector_store %arg6[%c12, %c16_26], %61 {strides = array<i32>} : memref<16x32xf32, #tpu.memory_space<vmem>>, vector<2x16xf32>,
    %63 = vector.extract_strided_slice %16 {offsets = [4, 0], sizes = [2, 128], strides = [1, 1]} : vector<16x128xf32> to vector<2x128xf32>
    %cst_27 = arith.constant dense<0.000000e+00> : vector<2x128xf32>
    %64 = tpu.matmul %58, %1, %cst_27 {dimension_numbers = #tpu.dot_dimension_numbers<[1], [0], [0], [1], [0, 0, 1, 1], [], []>} : vector<2x32xf32>, vector<32x128xf32>, vector<2x128xf32> -> vector<2x128xf32>
    %65 = arith.addf %63, %64 : vector<2x128xf32>
    %66 = vector.extract_strided_slice %65 {offsets = [0, 0], sizes = [2, 96], strides = [1, 1]} : vector<2x128xf32> to vector<2x96xf32>
    %67 = arith.negf %66 : vector<2x96xf32>
    %68 = math.exp %67 : vector<2x96xf32>
    %cst_28 = arith.constant 1.000000e+00 : f32
    %69 = vector.broadcast %cst_28 : f32 to vector<2x96xf32>
    %70 = arith.addf %69, %68 : vector<2x96xf32>
    %71 = arith.divf %69, %70 : vector<2x96xf32>
    %72 = vector.extract_strided_slice %65 {offsets = [0, 96], sizes = [2, 32], strides = [1, 1]} : vector<2x128xf32> to vector<2x32xf32>
    %73 = math.tanh %72 : vector<2x32xf32>
    %74 = vector.extract_strided_slice %71 {offsets = [0, 0], sizes = [2, 32], strides = [1, 1]} : vector<2x96xf32> to vector<2x32xf32>
    %75 = vector.extract_strided_slice %71 {offsets = [0, 32], sizes = [2, 32], strides = [1, 1]} : vector<2x96xf32> to vector<2x32xf32>
    %76 = vector.extract_strided_slice %71 {offsets = [0, 64], sizes = [2, 32], strides = [1, 1]} : vector<2x96xf32> to vector<2x32xf32>
    %77 = arith.mulf %75, %56 : vector<2x32xf32>
    %78 = arith.mulf %74, %73 : vector<2x32xf32>
    %79 = arith.addf %77, %78 : vector<2x32xf32>
    %80 = math.tanh %79 : vector<2x32xf32>
    %81 = arith.mulf %76, %80 : vector<2x32xf32>
    %82 = vector.extract_strided_slice %81 {offsets = [0, 0], sizes = [2, 16], strides = [1, 1]} : vector<2x32xf32> to vector<2x16xf32>
    %c4 = arith.constant 4 : index
    %c0_29 = arith.constant 0 : index
    %83 = vector.load %arg6[%c4, %c0_29] : memref<16x32xf32, #tpu.memory_space<vmem>>, vector<2x16xf32>
    tpu.vector_store %arg6[%c4, %c0_29], %82 {strides = array<i32>} : memref<16x32xf32, #tpu.memory_space<vmem>>, vector<2x16xf32>,
    %84 = vector.extract_strided_slice %81 {offsets = [0, 16], sizes = [2, 16], strides = [1, 1]} : vector<2x32xf32> to vector<2x16xf32>
    %c10 = arith.constant 10 : index
    %c16_30 = arith.constant 16 : index
    %85 = vector.load %arg6[%c10, %c16_30] : memref<16x32xf32, #tpu.memory_space<vmem>>, vector<2x16xf32>
    tpu.vector_store %arg6[%c10, %c16_30], %84 {strides = array<i32>} : memref<16x32xf32, #tpu.memory_space<vmem>>, vector<2x16xf32>,
    %86 = vector.extract_strided_slice %16 {offsets = [6, 0], sizes = [2, 128], strides = [1, 1]} : vector<16x128xf32> to vector<2x128xf32>
    %cst_31 = arith.constant dense<0.000000e+00> : vector<2x128xf32>
    %87 = tpu.matmul %81, %1, %cst_31 {dimension_numbers = #tpu.dot_dimension_numbers<[1], [0], [0], [1], [0, 0, 1, 1], [], []>} : vector<2x32xf32>, vector<32x128xf32>, vector<2x128xf32> -> vector<2x128xf32>
    %88 = arith.addf %86, %87 : vector<2x128xf32>
    %89 = vector.extract_strided_slice %88 {offsets = [0, 0], sizes = [2, 96], strides = [1, 1]} : vector<2x128xf32> to vector<2x96xf32>
    %90 = arith.negf %89 : vector<2x96xf32>
    %91 = math.exp %90 : vector<2x96xf32>
    %cst_32 = arith.constant 1.000000e+00 : f32
    %92 = vector.broadcast %cst_32 : f32 to vector<2x96xf32>
    %93 = arith.addf %92, %91 : vector<2x96xf32>
    %94 = arith.divf %92, %93 : vector<2x96xf32>
    %95 = vector.extract_strided_slice %88 {offsets = [0, 96], sizes = [2, 32], strides = [1, 1]} : vector<2x128xf32> to vector<2x32xf32>
    %96 = math.tanh %95 : vector<2x32xf32>
    %97 = vector.extract_strided_slice %94 {offsets = [0, 0], sizes = [2, 32], strides = [1, 1]} : vector<2x96xf32> to vector<2x32xf32>
    %98 = vector.extract_strided_slice %94 {offsets = [0, 32], sizes = [2, 32], strides = [1, 1]} : vector<2x96xf32> to vector<2x32xf32>
    %99 = vector.extract_strided_slice %94 {offsets = [0, 64], sizes = [2, 32], strides = [1, 1]} : vector<2x96xf32> to vector<2x32xf32>
    %100 = arith.mulf %98, %79 : vector<2x32xf32>
    %101 = arith.mulf %97, %96 : vector<2x32xf32>
    %102 = arith.addf %100, %101 : vector<2x32xf32>
    %103 = math.tanh %102 : vector<2x32xf32>
    %104 = arith.mulf %99, %103 : vector<2x32xf32>
    %105 = vector.extract_strided_slice %104 {offsets = [0, 0], sizes = [2, 16], strides = [1, 1]} : vector<2x32xf32> to vector<2x16xf32>
    %c6 = arith.constant 6 : index
    %c0_33 = arith.constant 0 : index
    %106 = vector.load %arg6[%c6, %c0_33] : memref<16x32xf32, #tpu.memory_space<vmem>>, vector<2x16xf32>
    tpu.vector_store %arg6[%c6, %c0_33], %105 {strides = array<i32>} : memref<16x32xf32, #tpu.memory_space<vmem>>, vector<2x16xf32>,
    %107 = vector.extract_strided_slice %104 {offsets = [0, 16], sizes = [2, 16], strides = [1, 1]} : vector<2x32xf32> to vector<2x16xf32>
    %c8 = arith.constant 8 : index
    %c16_34 = arith.constant 16 : index
    %108 = vector.load %arg6[%c8, %c16_34] : memref<16x32xf32, #tpu.memory_space<vmem>>, vector<2x16xf32>
    tpu.vector_store %arg6[%c8, %c16_34], %107 {strides = array<i32>} : memref<16x32xf32, #tpu.memory_space<vmem>>, vector<2x16xf32>,
    %109 = vector.extract_strided_slice %16 {offsets = [8, 0], sizes = [2, 128], strides = [1, 1]} : vector<16x128xf32> to vector<2x128xf32>
    %cst_35 = arith.constant dense<0.000000e+00> : vector<2x128xf32>
    %110 = tpu.matmul %104, %1, %cst_35 {dimension_numbers = #tpu.dot_dimension_numbers<[1], [0], [0], [1], [0, 0, 1, 1], [], []>} : vector<2x32xf32>, vector<32x128xf32>, vector<2x128xf32> -> vector<2x128xf32>
    %111 = arith.addf %109, %110 : vector<2x128xf32>
    %112 = vector.extract_strided_slice %111 {offsets = [0, 0], sizes = [2, 96], strides = [1, 1]} : vector<2x128xf32> to vector<2x96xf32>
    %113 = arith.negf %112 : vector<2x96xf32>
    %114 = math.exp %113 : vector<2x96xf32>
    %cst_36 = arith.constant 1.000000e+00 : f32
    %115 = vector.broadcast %cst_36 : f32 to vector<2x96xf32>
    %116 = arith.addf %115, %114 : vector<2x96xf32>
    %117 = arith.divf %115, %116 : vector<2x96xf32>
    %118 = vector.extract_strided_slice %111 {offsets = [0, 96], sizes = [2, 32], strides = [1, 1]} : vector<2x128xf32> to vector<2x32xf32>
    %119 = math.tanh %118 : vector<2x32xf32>
    %120 = vector.extract_strided_slice %117 {offsets = [0, 0], sizes = [2, 32], strides = [1, 1]} : vector<2x96xf32> to vector<2x32xf32>
    %121 = vector.extract_strided_slice %117 {offsets = [0, 32], sizes = [2, 32], strides = [1, 1]} : vector<2x96xf32> to vector<2x32xf32>
    %122 = vector.extract_strided_slice %117 {offsets = [0, 64], sizes = [2, 32], strides = [1, 1]} : vector<2x96xf32> to vector<2x32xf32>
    %123 = arith.mulf %121, %102 : vector<2x32xf32>
    %124 = arith.mulf %120, %119 : vector<2x32xf32>
    %125 = arith.addf %123, %124 : vector<2x32xf32>
    %126 = math.tanh %125 : vector<2x32xf32>
    %127 = arith.mulf %122, %126 : vector<2x32xf32>
    %128 = vector.extract_strided_slice %127 {offsets = [0, 0], sizes = [2, 16], strides = [1, 1]} : vector<2x32xf32> to vector<2x16xf32>
    %c8_37 = arith.constant 8 : index
    %c0_38 = arith.constant 0 : index
    %129 = vector.load %arg6[%c8_37, %c0_38] : memref<16x32xf32, #tpu.memory_space<vmem>>, vector<2x16xf32>
    tpu.vector_store %arg6[%c8_37, %c0_38], %128 {strides = array<i32>} : memref<16x32xf32, #tpu.memory_space<vmem>>, vector<2x16xf32>,
    %130 = vector.extract_strided_slice %127 {offsets = [0, 16], sizes = [2, 16], strides = [1, 1]} : vector<2x32xf32> to vector<2x16xf32>
    %c6_39 = arith.constant 6 : index
    %c16_40 = arith.constant 16 : index
    %131 = vector.load %arg6[%c6_39, %c16_40] : memref<16x32xf32, #tpu.memory_space<vmem>>, vector<2x16xf32>
    tpu.vector_store %arg6[%c6_39, %c16_40], %130 {strides = array<i32>} : memref<16x32xf32, #tpu.memory_space<vmem>>, vector<2x16xf32>,
    %132 = vector.extract_strided_slice %16 {offsets = [10, 0], sizes = [2, 128], strides = [1, 1]} : vector<16x128xf32> to vector<2x128xf32>
    %cst_41 = arith.constant dense<0.000000e+00> : vector<2x128xf32>
    %133 = tpu.matmul %127, %1, %cst_41 {dimension_numbers = #tpu.dot_dimension_numbers<[1], [0], [0], [1], [0, 0, 1, 1], [], []>} : vector<2x32xf32>, vector<32x128xf32>, vector<2x128xf32> -> vector<2x128xf32>
    %134 = arith.addf %132, %133 : vector<2x128xf32>
    %135 = vector.extract_strided_slice %134 {offsets = [0, 0], sizes = [2, 96], strides = [1, 1]} : vector<2x128xf32> to vector<2x96xf32>
    %136 = arith.negf %135 : vector<2x96xf32>
    %137 = math.exp %136 : vector<2x96xf32>
    %cst_42 = arith.constant 1.000000e+00 : f32
    %138 = vector.broadcast %cst_42 : f32 to vector<2x96xf32>
    %139 = arith.addf %138, %137 : vector<2x96xf32>
    %140 = arith.divf %138, %139 : vector<2x96xf32>
    %141 = vector.extract_strided_slice %134 {offsets = [0, 96], sizes = [2, 32], strides = [1, 1]} : vector<2x128xf32> to vector<2x32xf32>
    %142 = math.tanh %141 : vector<2x32xf32>
    %143 = vector.extract_strided_slice %140 {offsets = [0, 0], sizes = [2, 32], strides = [1, 1]} : vector<2x96xf32> to vector<2x32xf32>
    %144 = vector.extract_strided_slice %140 {offsets = [0, 32], sizes = [2, 32], strides = [1, 1]} : vector<2x96xf32> to vector<2x32xf32>
    %145 = vector.extract_strided_slice %140 {offsets = [0, 64], sizes = [2, 32], strides = [1, 1]} : vector<2x96xf32> to vector<2x32xf32>
    %146 = arith.mulf %144, %125 : vector<2x32xf32>
    %147 = arith.mulf %143, %142 : vector<2x32xf32>
    %148 = arith.addf %146, %147 : vector<2x32xf32>
    %149 = math.tanh %148 : vector<2x32xf32>
    %150 = arith.mulf %145, %149 : vector<2x32xf32>
    %151 = vector.extract_strided_slice %150 {offsets = [0, 0], sizes = [2, 16], strides = [1, 1]} : vector<2x32xf32> to vector<2x16xf32>
    %c10_43 = arith.constant 10 : index
    %c0_44 = arith.constant 0 : index
    %152 = vector.load %arg6[%c10_43, %c0_44] : memref<16x32xf32, #tpu.memory_space<vmem>>, vector<2x16xf32>
    tpu.vector_store %arg6[%c10_43, %c0_44], %151 {strides = array<i32>} : memref<16x32xf32, #tpu.memory_space<vmem>>, vector<2x16xf32>,
    %153 = vector.extract_strided_slice %150 {offsets = [0, 16], sizes = [2, 16], strides = [1, 1]} : vector<2x32xf32> to vector<2x16xf32>
    %c4_45 = arith.constant 4 : index
    %c16_46 = arith.constant 16 : index
    %154 = vector.load %arg6[%c4_45, %c16_46] : memref<16x32xf32, #tpu.memory_space<vmem>>, vector<2x16xf32>
    tpu.vector_store %arg6[%c4_45, %c16_46], %153 {strides = array<i32>} : memref<16x32xf32, #tpu.memory_space<vmem>>, vector<2x16xf32>,
    %155 = vector.extract_strided_slice %16 {offsets = [12, 0], sizes = [2, 128], strides = [1, 1]} : vector<16x128xf32> to vector<2x128xf32>
    %cst_47 = arith.constant dense<0.000000e+00> : vector<2x128xf32>
    %156 = tpu.matmul %150, %1, %cst_47 {dimension_numbers = #tpu.dot_dimension_numbers<[1], [0], [0], [1], [0, 0, 1, 1], [], []>} : vector<2x32xf32>, vector<32x128xf32>, vector<2x128xf32> -> vector<2x128xf32>
    %157 = arith.addf %155, %156 : vector<2x128xf32>
    %158 = vector.extract_strided_slice %157 {offsets = [0, 0], sizes = [2, 96], strides = [1, 1]} : vector<2x128xf32> to vector<2x96xf32>
    %159 = arith.negf %158 : vector<2x96xf32>
    %160 = math.exp %159 : vector<2x96xf32>
    %cst_48 = arith.constant 1.000000e+00 : f32
    %161 = vector.broadcast %cst_48 : f32 to vector<2x96xf32>
    %162 = arith.addf %161, %160 : vector<2x96xf32>
    %163 = arith.divf %161, %162 : vector<2x96xf32>
    %164 = vector.extract_strided_slice %157 {offsets = [0, 96], sizes = [2, 32], strides = [1, 1]} : vector<2x128xf32> to vector<2x32xf32>
    %165 = math.tanh %164 : vector<2x32xf32>
    %166 = vector.extract_strided_slice %163 {offsets = [0, 0], sizes = [2, 32], strides = [1, 1]} : vector<2x96xf32> to vector<2x32xf32>
    %167 = vector.extract_strided_slice %163 {offsets = [0, 32], sizes = [2, 32], strides = [1, 1]} : vector<2x96xf32> to vector<2x32xf32>
    %168 = vector.extract_strided_slice %163 {offsets = [0, 64], sizes = [2, 32], strides = [1, 1]} : vector<2x96xf32> to vector<2x32xf32>
    %169 = arith.mulf %167, %148 : vector<2x32xf32>
    %170 = arith.mulf %166, %165 : vector<2x32xf32>
    %171 = arith.addf %169, %170 : vector<2x32xf32>
    %172 = math.tanh %171 : vector<2x32xf32>
    %173 = arith.mulf %168, %172 : vector<2x32xf32>
    %174 = vector.extract_strided_slice %173 {offsets = [0, 0], sizes = [2, 16], strides = [1, 1]} : vector<2x32xf32> to vector<2x16xf32>
    %c12_49 = arith.constant 12 : index
    %c0_50 = arith.constant 0 : index
    %175 = vector.load %arg6[%c12_49, %c0_50] : memref<16x32xf32, #tpu.memory_space<vmem>>, vector<2x16xf32>
    tpu.vector_store %arg6[%c12_49, %c0_50], %174 {strides = array<i32>} : memref<16x32xf32, #tpu.memory_space<vmem>>, vector<2x16xf32>,
    %176 = vector.extract_strided_slice %173 {offsets = [0, 16], sizes = [2, 16], strides = [1, 1]} : vector<2x32xf32> to vector<2x16xf32>
    %c2_51 = arith.constant 2 : index
    %c16_52 = arith.constant 16 : index
    %177 = vector.load %arg6[%c2_51, %c16_52] : memref<16x32xf32, #tpu.memory_space<vmem>>, vector<2x16xf32>
    tpu.vector_store %arg6[%c2_51, %c16_52], %176 {strides = array<i32>} : memref<16x32xf32, #tpu.memory_space<vmem>>, vector<2x16xf32>,
    %178 = vector.extract_strided_slice %16 {offsets = [14, 0], sizes = [2, 128], strides = [1, 1]} : vector<16x128xf32> to vector<2x128xf32>
    %cst_53 = arith.constant dense<0.000000e+00> : vector<2x128xf32>
    %179 = tpu.matmul %173, %1, %cst_53 {dimension_numbers = #tpu.dot_dimension_numbers<[1], [0], [0], [1], [0, 0, 1, 1], [], []>} : vector<2x32xf32>, vector<32x128xf32>, vector<2x128xf32> -> vector<2x128xf32>
    %180 = arith.addf %178, %179 : vector<2x128xf32>
    %181 = vector.extract_strided_slice %180 {offsets = [0, 0], sizes = [2, 96], strides = [1, 1]} : vector<2x128xf32> to vector<2x96xf32>
    %182 = arith.negf %181 : vector<2x96xf32>
    %183 = math.exp %182 : vector<2x96xf32>
    %cst_54 = arith.constant 1.000000e+00 : f32
    %184 = vector.broadcast %cst_54 : f32 to vector<2x96xf32>
    %185 = arith.addf %184, %183 : vector<2x96xf32>
    %186 = arith.divf %184, %185 : vector<2x96xf32>
    %187 = vector.extract_strided_slice %180 {offsets = [0, 96], sizes = [2, 32], strides = [1, 1]} : vector<2x128xf32> to vector<2x32xf32>
    %188 = math.tanh %187 : vector<2x32xf32>
    %189 = vector.extract_strided_slice %186 {offsets = [0, 0], sizes = [2, 32], strides = [1, 1]} : vector<2x96xf32> to vector<2x32xf32>
    %190 = vector.extract_strided_slice %186 {offsets = [0, 32], sizes = [2, 32], strides = [1, 1]} : vector<2x96xf32> to vector<2x32xf32>
    %191 = vector.extract_strided_slice %186 {offsets = [0, 64], sizes = [2, 32], strides = [1, 1]} : vector<2x96xf32> to vector<2x32xf32>
    %192 = arith.mulf %190, %171 : vector<2x32xf32>
    %193 = arith.mulf %189, %188 : vector<2x32xf32>
    %194 = arith.addf %192, %193 : vector<2x32xf32>
    %195 = math.tanh %194 : vector<2x32xf32>
    %196 = arith.mulf %191, %195 : vector<2x32xf32>
    %197 = vector.extract_strided_slice %196 {offsets = [0, 0], sizes = [2, 16], strides = [1, 1]} : vector<2x32xf32> to vector<2x16xf32>
    %c14_55 = arith.constant 14 : index
    %c0_56 = arith.constant 0 : index
    %198 = vector.load %arg6[%c14_55, %c0_56] : memref<16x32xf32, #tpu.memory_space<vmem>>, vector<2x16xf32>
    tpu.vector_store %arg6[%c14_55, %c0_56], %197 {strides = array<i32>} : memref<16x32xf32, #tpu.memory_space<vmem>>, vector<2x16xf32>,
    %199 = vector.extract_strided_slice %196 {offsets = [0, 16], sizes = [2, 16], strides = [1, 1]} : vector<2x32xf32> to vector<2x16xf32>
    %c0_57 = arith.constant 0 : index
    %c16_58 = arith.constant 16 : index
    %200 = vector.load %arg6[%c0_57, %c16_58] : memref<16x32xf32, #tpu.memory_space<vmem>>, vector<2x16xf32>
    tpu.vector_store %arg6[%c0_57, %c16_58], %199 {strides = array<i32>} : memref<16x32xf32, #tpu.memory_space<vmem>>, vector<2x16xf32>,
    %c0_59 = arith.constant 0 : index
    %c0_60 = arith.constant 0 : index
    %201 = vector.load %arg6[%c0_59, %c0_60] : memref<16x32xf32, #tpu.memory_space<vmem>>, vector<16x32xf32>
    %cst_61 = arith.constant dense<0.000000e+00> : vector<16x6xf32>
    %202 = tpu.matmul %201, %5, %cst_61 {dimension_numbers = #tpu.dot_dimension_numbers<[1], [0], [0], [1], [0, 0, 1, 1], [], []>} : vector<16x32xf32>, vector<32x6xf32>, vector<16x6xf32> -> vector<16x6xf32>
    %203 = vector.broadcast %9 : vector<1x6xf32> to vector<16x6xf32>
    %204 = arith.addf %202, %203 : vector<16x6xf32>
    %cst_62 = arith.constant dense<0.000000e+00> : vector<16x6xf32>
    %205 = tpu.matmul %11, %8, %cst_62 {dimension_numbers = #tpu.dot_dimension_numbers<[1], [0], [0], [1], [0, 0, 1, 1], [], []>} : vector<16x6xf32>, vector<6x6xf32>, vector<16x6xf32> -> vector<16x6xf32>
    %206 = arith.addf %205, %204 : vector<16x6xf32>
    %207 = arith.mulf %12, %206 : vector<16x6xf32>
    %cst_63 = arith.constant dense<0.000000e+00> : vector<16xf32>
    %208 = vector.multi_reduction <add>, %207, %cst_63 [1] : vector<16x6xf32> to vector<16xf32>
    %209 = vector.shape_cast %208 : vector<16xf32> to vector<16x1xf32>
    %cst_64 = arith.constant dense<0.000000e+00> : vector<1xf32>
    %210 = vector.multi_reduction <add>, %209, %cst_64 [0] : vector<16x1xf32> to vector<1xf32>
    %211 = vector.shape_cast %210 : vector<1xf32> to vector<1x1xf32>
    %212 = vector.extract_strided_slice %12 {offsets = [14, 0], sizes = [2, 6], strides = [1, 1]} : vector<16x6xf32> to vector<2x6xf32>
    %213 = vector.broadcast %10 : vector<1x6xf32> to vector<2x6xf32>
    %214 = arith.mulf %212, %213 : vector<2x6xf32>
    %cst_65 = arith.constant dense<0.000000e+00> : vector<2xf32>
    %215 = vector.multi_reduction <add>, %214, %cst_65 [1] : vector<2x6xf32> to vector<2xf32>
    %216 = vector.shape_cast %215 : vector<2xf32> to vector<2x1xf32>
    %cst_66 = arith.constant dense<0.000000e+00> : vector<1xf32>
    %217 = vector.multi_reduction <add>, %216, %cst_66 [0] : vector<2x1xf32> to vector<1xf32>
    %218 = vector.shape_cast %217 : vector<1xf32> to vector<1x1xf32>
    %219 = arith.addf %211, %218 : vector<1x1xf32>
    %220 = tpu.iota {dimensions = array<i32: 1>} : vector<2x6xi32>
    %c4_i32 = arith.constant 4 : i32
    %221 = vector.broadcast %c4_i32 : i32 to vector<2x6xi32>
    %222 = arith.cmpi eq, %220, %221 : vector<2x6xi32>
    %cst_67 = arith.constant 0.000000e+00 : f32
    %cst_68 = arith.constant -1.000000e+04 : f32
    %223 = vector.broadcast %cst_67 : f32 to vector<2x6xf32>
    %224 = vector.broadcast %cst_68 : f32 to vector<2x6xf32>
    %225 = arith.select %222, %223, %224 : vector<2x6xi1>, vector<2x6xf32>
    %226 = vector.extract_strided_slice %204 {offsets = [0, 0], sizes = [2, 6], strides = [1, 1]} : vector<16x6xf32> to vector<2x6xf32>
    %227 = tpu.concatenate %226, %226, %226, %226, %226, %226 in 0 : vector<2x6xf32>, vector<2x6xf32>, vector<2x6xf32>, vector<2x6xf32>, vector<2x6xf32>, vector<2x6xf32> -> vector<12x6xf32>
    %228 = arith.mulf %227, %7 : vector<12x6xf32>
    %cst_69 = arith.constant dense<0.000000e+00> : vector<12xf32>
    %229 = vector.multi_reduction <add>, %228, %cst_69 [1] : vector<12x6xf32> to vector<12xf32>
    %230 = vector.shape_cast %229 : vector<12xf32> to vector<12x1xf32>
    %231 = tpu.concatenate %225, %225, %225, %225, %225, %225 in 0 : vector<2x6xf32>, vector<2x6xf32>, vector<2x6xf32>, vector<2x6xf32>, vector<2x6xf32>, vector<2x6xf32> -> vector<12x6xf32>
    %232 = arith.addf %231, %6 : vector<12x6xf32>
    %233 = vector.broadcast %230 : vector<12x1xf32> to vector<12x6xf32>
    %234 = arith.addf %232, %233 : vector<12x6xf32>
    %cst_70 = arith.constant dense<0xFF800000> : vector<12xf32>
    %235 = vector.multi_reduction <maximumf>, %234, %cst_70 [1] : vector<12x6xf32> to vector<12xf32>
    %236 = vector.shape_cast %235 : vector<12xf32> to vector<12x1xf32>
    %237 = vector.broadcast %236 : vector<12x1xf32> to vector<12x6xf32>
    %238 = arith.subf %234, %237 : vector<12x6xf32>
    %239 = math.exp %238 : vector<12x6xf32>
    %cst_71 = arith.constant dense<0.000000e+00> : vector<12xf32>
    %240 = vector.multi_reduction <add>, %239, %cst_71 [1] : vector<12x6xf32> to vector<12xf32>
    %241 = vector.shape_cast %240 : vector<12xf32> to vector<12x1xf32>
    %242 = math.log %241 : vector<12x1xf32>
    %243 = arith.addf %236, %242 : vector<12x1xf32>
    %244 = vector.extract_strided_slice %243 {offsets = [0, 0], sizes = [6, 1], strides = [1, 1]} : vector<12x1xf32> to vector<6x1xf32>
    %245 = vector.extract_strided_slice %243 {offsets = [6, 0], sizes = [6, 1], strides = [1, 1]} : vector<12x1xf32> to vector<6x1xf32>
    %246 = tpu.concatenate %244, %245 in 1 : vector<6x1xf32>, vector<6x1xf32> -> vector<6x2xf32>
    %247 = tpu.transpose %246, [1, 0] : vector<6x2xf32> -> vector<2x6xf32>
    %248 = vector.extract_strided_slice %204 {offsets = [2, 0], sizes = [2, 6], strides = [1, 1]} : vector<16x6xf32> to vector<2x6xf32>
    %249 = tpu.concatenate %248, %248, %248, %248, %248, %248 in 0 : vector<2x6xf32>, vector<2x6xf32>, vector<2x6xf32>, vector<2x6xf32>, vector<2x6xf32>, vector<2x6xf32> -> vector<12x6xf32>
    %250 = arith.mulf %249, %7 : vector<12x6xf32>
    %cst_72 = arith.constant dense<0.000000e+00> : vector<12xf32>
    %251 = vector.multi_reduction <add>, %250, %cst_72 [1] : vector<12x6xf32> to vector<12xf32>
    %252 = vector.shape_cast %251 : vector<12xf32> to vector<12x1xf32>
    %253 = tpu.concatenate %247, %247, %247, %247, %247, %247 in 0 : vector<2x6xf32>, vector<2x6xf32>, vector<2x6xf32>, vector<2x6xf32>, vector<2x6xf32>, vector<2x6xf32> -> vector<12x6xf32>
    %254 = arith.addf %253, %6 : vector<12x6xf32>
    %255 = vector.broadcast %252 : vector<12x1xf32> to vector<12x6xf32>
    %256 = arith.addf %254, %255 : vector<12x6xf32>
    %cst_73 = arith.constant dense<0xFF800000> : vector<12xf32>
    %257 = vector.multi_reduction <maximumf>, %256, %cst_73 [1] : vector<12x6xf32> to vector<12xf32>
    %258 = vector.shape_cast %257 : vector<12xf32> to vector<12x1xf32>
    %259 = vector.broadcast %258 : vector<12x1xf32> to vector<12x6xf32>
    %260 = arith.subf %256, %259 : vector<12x6xf32>
    %261 = math.exp %260 : vector<12x6xf32>
    %cst_74 = arith.constant dense<0.000000e+00> : vector<12xf32>
    %262 = vector.multi_reduction <add>, %261, %cst_74 [1] : vector<12x6xf32> to vector<12xf32>
    %263 = vector.shape_cast %262 : vector<12xf32> to vector<12x1xf32>
    %264 = math.log %263 : vector<12x1xf32>
    %265 = arith.addf %258, %264 : vector<12x1xf32>
    %266 = vector.extract_strided_slice %265 {offsets = [0, 0], sizes = [6, 1], strides = [1, 1]} : vector<12x1xf32> to vector<6x1xf32>
    %267 = vector.extract_strided_slice %265 {offsets = [6, 0], sizes = [6, 1], strides = [1, 1]} : vector<12x1xf32> to vector<6x1xf32>
    %268 = tpu.concatenate %266, %267 in 1 : vector<6x1xf32>, vector<6x1xf32> -> vector<6x2xf32>
    %269 = tpu.transpose %268, [1, 0] : vector<6x2xf32> -> vector<2x6xf32>
    %270 = vector.extract_strided_slice %204 {offsets = [4, 0], sizes = [2, 6], strides = [1, 1]} : vector<16x6xf32> to vector<2x6xf32>
    %271 = tpu.concatenate %270, %270, %270, %270, %270, %270 in 0 : vector<2x6xf32>, vector<2x6xf32>, vector<2x6xf32>, vector<2x6xf32>, vector<2x6xf32>, vector<2x6xf32> -> vector<12x6xf32>
    %272 = arith.mulf %271, %7 : vector<12x6xf32>
    %cst_75 = arith.constant dense<0.000000e+00> : vector<12xf32>
    %273 = vector.multi_reduction <add>, %272, %cst_75 [1] : vector<12x6xf32> to vector<12xf32>
    %274 = vector.shape_cast %273 : vector<12xf32> to vector<12x1xf32>
    %275 = tpu.concatenate %269, %269, %269, %269, %269, %269 in 0 : vector<2x6xf32>, vector<2x6xf32>, vector<2x6xf32>, vector<2x6xf32>, vector<2x6xf32>, vector<2x6xf32> -> vector<12x6xf32>
    %276 = arith.addf %275, %6 : vector<12x6xf32>
    %277 = vector.broadcast %274 : vector<12x1xf32> to vector<12x6xf32>
    %278 = arith.addf %276, %277 : vector<12x6xf32>
    %cst_76 = arith.constant dense<0xFF800000> : vector<12xf32>
    %279 = vector.multi_reduction <maximumf>, %278, %cst_76 [1] : vector<12x6xf32> to vector<12xf32>
    %280 = vector.shape_cast %279 : vector<12xf32> to vector<12x1xf32>
    %281 = vector.broadcast %280 : vector<12x1xf32> to vector<12x6xf32>
    %282 = arith.subf %278, %281 : vector<12x6xf32>
    %283 = math.exp %282 : vector<12x6xf32>
    %cst_77 = arith.constant dense<0.000000e+00> : vector<12xf32>
    %284 = vector.multi_reduction <add>, %283, %cst_77 [1] : vector<12x6xf32> to vector<12xf32>
    %285 = vector.shape_cast %284 : vector<12xf32> to vector<12x1xf32>
    %286 = math.log %285 : vector<12x1xf32>
    %287 = arith.addf %280, %286 : vector<12x1xf32>
    %288 = vector.extract_strided_slice %287 {offsets = [0, 0], sizes = [6, 1], strides = [1, 1]} : vector<12x1xf32> to vector<6x1xf32>
    %289 = vector.extract_strided_slice %287 {offsets = [6, 0], sizes = [6, 1], strides = [1, 1]} : vector<12x1xf32> to vector<6x1xf32>
    %290 = tpu.concatenate %288, %289 in 1 : vector<6x1xf32>, vector<6x1xf32> -> vector<6x2xf32>
    %291 = tpu.transpose %290, [1, 0] : vector<6x2xf32> -> vector<2x6xf32>
    %292 = vector.extract_strided_slice %204 {offsets = [6, 0], sizes = [2, 6], strides = [1, 1]} : vector<16x6xf32> to vector<2x6xf32>
    %293 = tpu.concatenate %292, %292, %292, %292, %292, %292 in 0 : vector<2x6xf32>, vector<2x6xf32>, vector<2x6xf32>, vector<2x6xf32>, vector<2x6xf32>, vector<2x6xf32> -> vector<12x6xf32>
    %294 = arith.mulf %293, %7 : vector<12x6xf32>
    %cst_78 = arith.constant dense<0.000000e+00> : vector<12xf32>
    %295 = vector.multi_reduction <add>, %294, %cst_78 [1] : vector<12x6xf32> to vector<12xf32>
    %296 = vector.shape_cast %295 : vector<12xf32> to vector<12x1xf32>
    %297 = tpu.concatenate %291, %291, %291, %291, %291, %291 in 0 : vector<2x6xf32>, vector<2x6xf32>, vector<2x6xf32>, vector<2x6xf32>, vector<2x6xf32>, vector<2x6xf32> -> vector<12x6xf32>
    %298 = arith.addf %297, %6 : vector<12x6xf32>
    %299 = vector.broadcast %296 : vector<12x1xf32> to vector<12x6xf32>
    %300 = arith.addf %298, %299 : vector<12x6xf32>
    %cst_79 = arith.constant dense<0xFF800000> : vector<12xf32>
    %301 = vector.multi_reduction <maximumf>, %300, %cst_79 [1] : vector<12x6xf32> to vector<12xf32>
    %302 = vector.shape_cast %301 : vector<12xf32> to vector<12x1xf32>
    %303 = vector.broadcast %302 : vector<12x1xf32> to vector<12x6xf32>
    %304 = arith.subf %300, %303 : vector<12x6xf32>
    %305 = math.exp %304 : vector<12x6xf32>
    %cst_80 = arith.constant dense<0.000000e+00> : vector<12xf32>
    %306 = vector.multi_reduction <add>, %305, %cst_80 [1] : vector<12x6xf32> to vector<12xf32>
    %307 = vector.shape_cast %306 : vector<12xf32> to vector<12x1xf32>
    %308 = math.log %307 : vector<12x1xf32>
    %309 = arith.addf %302, %308 : vector<12x1xf32>
    %310 = vector.extract_strided_slice %309 {offsets = [0, 0], sizes = [6, 1], strides = [1, 1]} : vector<12x1xf32> to vector<6x1xf32>
    %311 = vector.extract_strided_slice %309 {offsets = [6, 0], sizes = [6, 1], strides = [1, 1]} : vector<12x1xf32> to vector<6x1xf32>
    %312 = tpu.concatenate %310, %311 in 1 : vector<6x1xf32>, vector<6x1xf32> -> vector<6x2xf32>
    %313 = tpu.transpose %312, [1, 0] : vector<6x2xf32> -> vector<2x6xf32>
    %314 = vector.extract_strided_slice %204 {offsets = [8, 0], sizes = [2, 6], strides = [1, 1]} : vector<16x6xf32> to vector<2x6xf32>
    %315 = tpu.concatenate %314, %314, %314, %314, %314, %314 in 0 : vector<2x6xf32>, vector<2x6xf32>, vector<2x6xf32>, vector<2x6xf32>, vector<2x6xf32>, vector<2x6xf32> -> vector<12x6xf32>
    %316 = arith.mulf %315, %7 : vector<12x6xf32>
    %cst_81 = arith.constant dense<0.000000e+00> : vector<12xf32>
    %317 = vector.multi_reduction <add>, %316, %cst_81 [1] : vector<12x6xf32> to vector<12xf32>
    %318 = vector.shape_cast %317 : vector<12xf32> to vector<12x1xf32>
    %319 = tpu.concatenate %313, %313, %313, %313, %313, %313 in 0 : vector<2x6xf32>, vector<2x6xf32>, vector<2x6xf32>, vector<2x6xf32>, vector<2x6xf32>, vector<2x6xf32> -> vector<12x6xf32>
    %320 = arith.addf %319, %6 : vector<12x6xf32>
    %321 = vector.broadcast %318 : vector<12x1xf32> to vector<12x6xf32>
    %322 = arith.addf %320, %321 : vector<12x6xf32>
    %cst_82 = arith.constant dense<0xFF800000> : vector<12xf32>
    %323 = vector.multi_reduction <maximumf>, %322, %cst_82 [1] : vector<12x6xf32> to vector<12xf32>
    %324 = vector.shape_cast %323 : vector<12xf32> to vector<12x1xf32>
    %325 = vector.broadcast %324 : vector<12x1xf32> to vector<12x6xf32>
    %326 = arith.subf %322, %325 : vector<12x6xf32>
    %327 = math.exp %326 : vector<12x6xf32>
    %cst_83 = arith.constant dense<0.000000e+00> : vector<12xf32>
    %328 = vector.multi_reduction <add>, %327, %cst_83 [1] : vector<12x6xf32> to vector<12xf32>
    %329 = vector.shape_cast %328 : vector<12xf32> to vector<12x1xf32>
    %330 = math.log %329 : vector<12x1xf32>
    %331 = arith.addf %324, %330 : vector<12x1xf32>
    %332 = vector.extract_strided_slice %331 {offsets = [0, 0], sizes = [6, 1], strides = [1, 1]} : vector<12x1xf32> to vector<6x1xf32>
    %333 = vector.extract_strided_slice %331 {offsets = [6, 0], sizes = [6, 1], strides = [1, 1]} : vector<12x1xf32> to vector<6x1xf32>
    %334 = tpu.concatenate %332, %333 in 1 : vector<6x1xf32>, vector<6x1xf32> -> vector<6x2xf32>
    %335 = tpu.transpose %334, [1, 0] : vector<6x2xf32> -> vector<2x6xf32>
    %336 = vector.extract_strided_slice %204 {offsets = [10, 0], sizes = [2, 6], strides = [1, 1]} : vector<16x6xf32> to vector<2x6xf32>
    %337 = tpu.concatenate %336, %336, %336, %336, %336, %336 in 0 : vector<2x6xf32>, vector<2x6xf32>, vector<2x6xf32>, vector<2x6xf32>, vector<2x6xf32>, vector<2x6xf32> -> vector<12x6xf32>
    %338 = arith.mulf %337, %7 : vector<12x6xf32>
    %cst_84 = arith.constant dense<0.000000e+00> : vector<12xf32>
    %339 = vector.multi_reduction <add>, %338, %cst_84 [1] : vector<12x6xf32> to vector<12xf32>
    %340 = vector.shape_cast %339 : vector<12xf32> to vector<12x1xf32>
    %341 = tpu.concatenate %335, %335, %335, %335, %335, %335 in 0 : vector<2x6xf32>, vector<2x6xf32>, vector<2x6xf32>, vector<2x6xf32>, vector<2x6xf32>, vector<2x6xf32> -> vector<12x6xf32>
    %342 = arith.addf %341, %6 : vector<12x6xf32>
    %343 = vector.broadcast %340 : vector<12x1xf32> to vector<12x6xf32>
    %344 = arith.addf %342, %343 : vector<12x6xf32>
    %cst_85 = arith.constant dense<0xFF800000> : vector<12xf32>
    %345 = vector.multi_reduction <maximumf>, %344, %cst_85 [1] : vector<12x6xf32> to vector<12xf32>
    %346 = vector.shape_cast %345 : vector<12xf32> to vector<12x1xf32>
    %347 = vector.broadcast %346 : vector<12x1xf32> to vector<12x6xf32>
    %348 = arith.subf %344, %347 : vector<12x6xf32>
    %349 = math.exp %348 : vector<12x6xf32>
    %cst_86 = arith.constant dense<0.000000e+00> : vector<12xf32>
    %350 = vector.multi_reduction <add>, %349, %cst_86 [1] : vector<12x6xf32> to vector<12xf32>
    %351 = vector.shape_cast %350 : vector<12xf32> to vector<12x1xf32>
    %352 = math.log %351 : vector<12x1xf32>
    %353 = arith.addf %346, %352 : vector<12x1xf32>
    %354 = vector.extract_strided_slice %353 {offsets = [0, 0], sizes = [6, 1], strides = [1, 1]} : vector<12x1xf32> to vector<6x1xf32>
    %355 = vector.extract_strided_slice %353 {offsets = [6, 0], sizes = [6, 1], strides = [1, 1]} : vector<12x1xf32> to vector<6x1xf32>
    %356 = tpu.concatenate %354, %355 in 1 : vector<6x1xf32>, vector<6x1xf32> -> vector<6x2xf32>
    %357 = tpu.transpose %356, [1, 0] : vector<6x2xf32> -> vector<2x6xf32>
    %358 = vector.extract_strided_slice %204 {offsets = [12, 0], sizes = [2, 6], strides = [1, 1]} : vector<16x6xf32> to vector<2x6xf32>
    %359 = tpu.concatenate %358, %358, %358, %358, %358, %358 in 0 : vector<2x6xf32>, vector<2x6xf32>, vector<2x6xf32>, vector<2x6xf32>, vector<2x6xf32>, vector<2x6xf32> -> vector<12x6xf32>
    %360 = arith.mulf %359, %7 : vector<12x6xf32>
    %cst_87 = arith.constant dense<0.000000e+00> : vector<12xf32>
    %361 = vector.multi_reduction <add>, %360, %cst_87 [1] : vector<12x6xf32> to vector<12xf32>
    %362 = vector.shape_cast %361 : vector<12xf32> to vector<12x1xf32>
    %363 = tpu.concatenate %357, %357, %357, %357, %357, %357 in 0 : vector<2x6xf32>, vector<2x6xf32>, vector<2x6xf32>, vector<2x6xf32>, vector<2x6xf32>, vector<2x6xf32> -> vector<12x6xf32>
    %364 = arith.addf %363, %6 : vector<12x6xf32>
    %365 = vector.broadcast %362 : vector<12x1xf32> to vector<12x6xf32>
    %366 = arith.addf %364, %365 : vector<12x6xf32>
    %cst_88 = arith.constant dense<0xFF800000> : vector<12xf32>
    %367 = vector.multi_reduction <maximumf>, %366, %cst_88 [1] : vector<12x6xf32> to vector<12xf32>
    %368 = vector.shape_cast %367 : vector<12xf32> to vector<12x1xf32>
    %369 = vector.broadcast %368 : vector<12x1xf32> to vector<12x6xf32>
    %370 = arith.subf %366, %369 : vector<12x6xf32>
    %371 = math.exp %370 : vector<12x6xf32>
    %cst_89 = arith.constant dense<0.000000e+00> : vector<12xf32>
    %372 = vector.multi_reduction <add>, %371, %cst_89 [1] : vector<12x6xf32> to vector<12xf32>
    %373 = vector.shape_cast %372 : vector<12xf32> to vector<12x1xf32>
    %374 = math.log %373 : vector<12x1xf32>
    %375 = arith.addf %368, %374 : vector<12x1xf32>
    %376 = vector.extract_strided_slice %375 {offsets = [0, 0], sizes = [6, 1], strides = [1, 1]} : vector<12x1xf32> to vector<6x1xf32>
    %377 = vector.extract_strided_slice %375 {offsets = [6, 0], sizes = [6, 1], strides = [1, 1]} : vector<12x1xf32> to vector<6x1xf32>
    %378 = tpu.concatenate %376, %377 in 1 : vector<6x1xf32>, vector<6x1xf32> -> vector<6x2xf32>
    %379 = tpu.transpose %378, [1, 0] : vector<6x2xf32> -> vector<2x6xf32>
    %380 = vector.extract_strided_slice %204 {offsets = [14, 0], sizes = [2, 6], strides = [1, 1]} : vector<16x6xf32> to vector<2x6xf32>
    %381 = tpu.concatenate %380, %380, %380, %380, %380, %380 in 0 : vector<2x6xf32>, vector<2x6xf32>, vector<2x6xf32>, vector<2x6xf32>, vector<2x6xf32>, vector<2x6xf32> -> vector<12x6xf32>
    %382 = arith.mulf %381, %7 : vector<12x6xf32>
    %cst_90 = arith.constant dense<0.000000e+00> : vector<12xf32>
    %383 = vector.multi_reduction <add>, %382, %cst_90 [1] : vector<12x6xf32> to vector<12xf32>
    %384 = vector.shape_cast %383 : vector<12xf32> to vector<12x1xf32>
    %385 = tpu.concatenate %379, %379, %379, %379, %379, %379 in 0 : vector<2x6xf32>, vector<2x6xf32>, vector<2x6xf32>, vector<2x6xf32>, vector<2x6xf32>, vector<2x6xf32> -> vector<12x6xf32>
    %386 = arith.addf %385, %6 : vector<12x6xf32>
    %387 = vector.broadcast %384 : vector<12x1xf32> to vector<12x6xf32>
    %388 = arith.addf %386, %387 : vector<12x6xf32>
    %cst_91 = arith.constant dense<0xFF800000> : vector<12xf32>
    %389 = vector.multi_reduction <maximumf>, %388, %cst_91 [1] : vector<12x6xf32> to vector<12xf32>
    %390 = vector.shape_cast %389 : vector<12xf32> to vector<12x1xf32>
    %391 = vector.broadcast %390 : vector<12x1xf32> to vector<12x6xf32>
    %392 = arith.subf %388, %391 : vector<12x6xf32>
    %393 = math.exp %392 : vector<12x6xf32>
    %cst_92 = arith.constant dense<0.000000e+00> : vector<12xf32>
    %394 = vector.multi_reduction <add>, %393, %cst_92 [1] : vector<12x6xf32> to vector<12xf32>
    %395 = vector.shape_cast %394 : vector<12xf32> to vector<12x1xf32>
    %396 = math.log %395 : vector<12x1xf32>
    %397 = arith.addf %390, %396 : vector<12x1xf32>
    %398 = vector.extract_strided_slice %397 {offsets = [0, 0], sizes = [6, 1], strides = [1, 1]} : vector<12x1xf32> to vector<6x1xf32>
    %399 = vector.extract_strided_slice %397 {offsets = [6, 0], sizes = [6, 1], strides = [1, 1]} : vector<12x1xf32> to vector<6x1xf32>
    %400 = tpu.concatenate %398, %399 in 1 : vector<6x1xf32>, vector<6x1xf32> -> vector<6x2xf32>
    %401 = tpu.transpose %400, [1, 0] : vector<6x2xf32> -> vector<2x6xf32>
    %402 = vector.broadcast %10 : vector<1x6xf32> to vector<2x6xf32>
    %403 = arith.addf %401, %402 : vector<2x6xf32>
    %cst_93 = arith.constant dense<0xFF800000> : vector<2xf32>
    %404 = vector.multi_reduction <maximumf>, %403, %cst_93 [1] : vector<2x6xf32> to vector<2xf32>
    %405 = vector.shape_cast %404 : vector<2xf32> to vector<2x1xf32>
    %406 = vector.broadcast %405 : vector<2x1xf32> to vector<2x6xf32>
    %407 = arith.subf %403, %406 : vector<2x6xf32>
    %408 = math.exp %407 : vector<2x6xf32>
    %cst_94 = arith.constant dense<0.000000e+00> : vector<2xf32>
    %409 = vector.multi_reduction <add>, %408, %cst_94 [1] : vector<2x6xf32> to vector<2xf32>
    %410 = vector.shape_cast %409 : vector<2xf32> to vector<2x1xf32>
    %411 = math.log %410 : vector<2x1xf32>
    %412 = arith.addf %405, %411 : vector<2x1xf32>
    %cst_95 = arith.constant dense<0.000000e+00> : vector<1xf32>
    %413 = vector.multi_reduction <add>, %412, %cst_95 [0] : vector<2x1xf32> to vector<1xf32>
    %414 = vector.shape_cast %413 : vector<1xf32> to vector<1x1xf32>
    %415 = arith.subf %219, %414 : vector<1x1xf32>
    %cst_96 = arith.constant 2.000000e+00 : f32
    %416 = vector.broadcast %cst_96 : f32 to vector<1x1xf32>
    %417 = arith.divf %415, %416 : vector<1x1xf32>
    %c0_97 = arith.constant 0 : index
    %c0_98 = arith.constant 0 : index
    %418 = vector.load %arg5[%c0_97, %c0_98] : memref<1x1xf32, #tpu.memory_space<vmem>>, vector<1x1xf32>
    tpu.vector_store %arg5[%c0_97, %c0_98], %417 {strides = array<i32>} : memref<1x1xf32, #tpu.memory_space<vmem>>, vector<1x1xf32>,
    return
  }
  func.func @transform_0(%arg0: i32) -> (i32, i32) {
    %c0_i32 = arith.constant 0 : i32
    %c0_i32_0 = arith.constant 0 : i32
    %c0_i32_1 = arith.constant 0 : i32
    return %c0_i32, %c0_i32_0 : i32, i32
  }
  func.func @transform_1(%arg0: i32) -> (i32, i32) {
    %c0_i32 = arith.constant 0 : i32
    %c0_i32_0 = arith.constant 0 : i32
    %c0_i32_1 = arith.constant 0 : i32
    return %c0_i32, %c0_i32_0 : i32, i32
  }
  func.func @transform_2(%arg0: i32) -> (i32, i32) {
    %c0_i32 = arith.constant 0 : i32
    %c0_i32_0 = arith.constant 0 : i32
    %c0_i32_1 = arith.constant 0 : i32
    return %c0_i32, %c0_i32_0 : i32, i32
  }
  func.func @transform_3(%arg0: i32) -> (i32, i32) {
    %c0_i32 = arith.constant 0 : i32
    %c0_i32_0 = arith.constant 0 : i32
    %c0_i32_1 = arith.constant 0 : i32
    return %c0_i32, %c0_i32_0 : i32, i32
  }
  func.func @transform_4(%arg0: i32) -> (i32, i32) {
    %c0_i32 = arith.constant 0 : i32
    %c0_i32_0 = arith.constant 0 : i32
    %c0_i32_1 = arith.constant 0 : i32
    return %c0_i32, %c0_i32_0 : i32, i32
  }
}

</mosaic_0001>

<llo_original>
// kernel: bilstm_crf_forward.1
$region0: #{bilstm_crf_forward.1}
  #allocation0 [shape = 'u32[]', space=smem, size = 0x4, offset = 0x4, fixed_abs, tag = 'smem constant byte address 0x4 - core index']
  #allocation1 [shape = 'u32[144,128]{1,0:T(1,128)}', space=vmem, size = 0x12000, scoped, tag = 'internal scratch']
  #allocation2 [shape = 'f32[16,32]{1,0:T(8,128)}', space=vmem, size = 0x2000, scoped, tag = 'scratch operand']
  %s0 = inlined_call_operand.vmem [shape: f32[16,16], index: 0, kind: input, shape index: {}]
  %s1 = inlined_call_operand.vmem [shape: f32[49,128], index: 1, kind: input, shape index: {}]
  %s2 = inlined_call_operand.vmem [shape: f32[4,32], index: 2, kind: input, shape index: {}]
  %s3 = inlined_call_operand.vmem [shape: f32[96,6], index: 3, kind: input, shape index: {}]
  %s4 = inlined_call_operand.hbm [shape: f32[1,1], index: 4, kind: output, shape index: {}]
  %s5 = sld [smem:[#allocation0]]
  $region26: #{bilstm_crf_forward.1} parent=0
    _
  %s7 = ssub.s32 1, %s5
  %s8 = scalar_select 0, %s7, %s5
  $region1: #{bilstm_crf_forward.1} parent=0
    #allocation3 [shape = 'u8[512]{0}', space=vmem, size = 0x400, scoped, tag = 'output window, operand 0, single buffered']
    #allocation4 [shape = 's32[1]{0}', space=sflag, size = 0x4, scoped, tag = 'scoped memory for bilstm_crf_forward.1']
    %9 = vsyncpa [#allocation4], 0
    // Predicated region
    $region2: #{bilstm_crf_forward.1} parent=1 // pred_check
      _
    $region3: #{bilstm_crf_forward.1} parent=1 // pred_check_branch
      %11 = sbr.rel (0) target = $region5
    $region4: #{bilstm_crf_forward.1} parent=1 // pred_region
      _
    $region5: #{bilstm_crf_forward.1} parent=1 // pred_fallthru
      _
    // Predicated region
    $region6: #{bilstm_crf_forward.1} parent=1 // pred_check
      _
    $region7: #{bilstm_crf_forward.1} parent=1 // pred_check_branch
      %13 = sbr.rel (0) target = $region9
    $region8: #{bilstm_crf_forward.1} parent=1 // pred_region
      _
    $region9: #{bilstm_crf_forward.1} parent=1 // pred_fallthru
      _
    // Predicated region
    $region10: #{bilstm_crf_forward.1} parent=1 // pred_check
      _
    $region11: #{bilstm_crf_forward.1} parent=1 // pred_check_branch
      %15 = sbr.rel (0) target = $region13
    $region12: #{bilstm_crf_forward.1} parent=1 // pred_region
      _
    $region13: #{bilstm_crf_forward.1} parent=1 // pred_fallthru
      _
    // Predicated region
    $region14: #{bilstm_crf_forward.1} parent=1 // pred_check
      _
    $region15: #{bilstm_crf_forward.1} parent=1 // pred_check_branch
      %17 = sbr.rel (0) target = $region17
    $region16: #{bilstm_crf_forward.1} parent=1 // pred_region
      _
    $region17: #{bilstm_crf_forward.1} parent=1 // pred_fallthru
      _
    %v18 = vld [vmem:[%s1] sm:$0xff]
    %v19 = vld [vmem:[%s1 + $0x8] sm:$0xff]
    %v20 = vld [vmem:[%s1 + $0x10] sm:$0xff]
    %v21 = vld [vmem:[%s1 + $0x18] sm:$0xff]
    %v22 = vld [vmem:[%s1 + $0x20] sm:$0xff]
    %v23 = vld [vmem:[%s1 + $0x28] sm:$0xff]
    %v24 = vld [vmem:[%s1 + $0x30] sm:$0x1]
    %v25 = vld [vmem:[%s2] sm:$0x3]
    %v26 = vld [vmem:[%s2 + $0x2] sm:$0x3]
    %v27 = vld [vmem:[%s3] sm:$0xff]
    %v28 = vld [vmem:[%s3 + $0x8] sm:$0xff]
    %v29 = vld [vmem:[%s3 + $0x10] sm:$0xff]
    %v30 = vld [vmem:[%s3 + $0x18] sm:$0xff]
    %v31 = vld [vmem:[%s3 + $0x20] sm:$0xff]
    %v32 = vld [vmem:[%s3 + $0x28] sm:$0xf]
    %v33 = vld [vmem:[%s3 + $0x2c] sm:$0xff]
    %v34 = vld [vmem:[%s3 + $0x34] sm:$0xf]
    %v35 = vld [vmem:[%s3 + $0x38] sm:$0x3f]
    %v36 = vld [vmem:[%s3 + $0x3e] sm:$0x1]
    %v37 = vld [vmem:[%s3 + $0x3f] sm:$0x1]
    %v38 = vld [vmem:[%s3 + $0x40] sm:$0xff]
    %v39 = vld [vmem:[%s3 + $0x48] sm:$0xff]
    %v40 = vld [vmem:[%s3 + $0x50] sm:$0xff]
    %v41 = vld [vmem:[%s3 + $0x58] sm:$0xff]
    %v42 = vld [vmem:[%s0] sm:$0xff]
    %v43 = vld [vmem:[%s0 + $0x8] sm:$0xff]
    %v44 = vlaneseq
    %v45 = vshrl.u32 %v44, 7
    %v46 = vsub.s32 0, %v45
    %v47 = vrot.slane %v24, %v46
    %vm48 = vcmask 130048
    %v50 = vsel %vm48, %v42, 0
    %v53 = vsel %vm48, %v43, 0
    %55 = vmatprep.subr.mxu0 0.0
    %56 = vmatpush1.msra.mxu0 %v18
    %57 = vmatprep.subr.mxu0 0.0
    %58 = vmatpush1.msra.mxu0 %v19
    %59 = vmatprep.subr.mxu0 0.0
    %60 = vmatpush1.msra.mxu0 0.0
    %61 = vmatprep.subr.mxu0 0.0
    %62 = vmatpush1.msra.mxu0 0.0
    %63 = vmatprep.subr.mxu0 0.0
    %64 = vmatpush1.msra.mxu0 0.0
    %65 = vmatprep.subr.mxu0 0.0
    %66 = vmatpush1.msra.mxu0 0.0
    %67 = vmatprep.subr.mxu0 0.0
    %68 = vmatpush1.msra.mxu0 0.0
    %69 = vmatprep.subr.mxu0 0.0
    %70 = vmatpush1.msra.mxu0 0.0
    %71 = vmatprep.subr.mxu0 0.0
    %72 = vmatpush1.msra.mxu0 0.0
    %73 = vmatprep.subr.mxu0 0.0
    %74 = vmatpush1.msra.mxu0 0.0
    %75 = vmatprep.subr.mxu0 0.0
    %76 = vmatpush1.msra.mxu0 0.0
    %77 = vmatprep.subr.mxu0 0.0
    %78 = vmatpush1.msra.mxu0 0.0
    %79 = vmatprep.subr.mxu0 0.0
    %80 = vmatpush1.msra.mxu0 0.0
    %81 = vmatprep.subr.mxu0 0.0
    %82 = vmatpush1.msra.mxu0 0.0
    %83 = vmatprep.subr.mxu0 0.0
    %84 = vmatpush1.msra.mxu0 0.0
    %85 = vmatprep.subr.mxu0 0.0
    %86 = vmatpush1.msra.mxu0 0.0
    %87 = vmatprep.subr.mxu0 0.0
    %88 = vmatpush1.msra.mxu0 0.0
    %89 = vmatprep.subr.mxu0 0.0
    %90 = vmatpush1.msra.mxu0 0.0
    %91 = vmatprep.subr.mxu0 0.0
    %92 = vmatpush1.msra.mxu0 0.0
    %93 = vmatprep.subr.mxu0 0.0
    %94 = vmatpush1.msra.mxu0 0.0
    %95 = vmatprep.subr.mxu0 0.0
    %96 = vmatpush1.msra.mxu0 0.0
    %97 = vmatprep.subr.mxu0 0.0
    %98 = vmatpush1.msra.mxu0 0.0
    %99 = vmatprep.subr.mxu0 0.0
    %100 = vmatpush1.msra.mxu0 0.0
    %101 = vmatprep.subr.mxu0 0.0
    %102 = vmatpush1.msra.mxu0 0.0
    %103 = vmatprep.subr.mxu0 0.0
    %104 = vmatpush1.msra.mxu0 0.0
    %105 = vmatprep.subr.mxu0 0.0
    %106 = vmatpush1.msra.mxu0 0.0
    %107 = vmatprep.subr.mxu0 0.0
    %108 = vmatpush1.msra.mxu0 0.0
    %109 = vmatprep.subr.mxu0 0.0
    %110 = vmatpush1.msra.mxu0 0.0
    %111 = vmatprep.subr.mxu0 0.0
    %112 = vmatpush1.msra.mxu0 0.0
    %113 = vmatprep.subr.mxu0 0.0
    %114 = vmatpush1.msra.mxu0 0.0
    %115 = vmatprep.subr.mxu0 0.0
    %116 = vmatpush1.msra.mxu0 0.0
    %117 = vmatprep.subr.mxu0 0.0
    %118 = vmatpush1.msra.mxu0 0.0
    %119 = vmatprep.mubr.f32.mxu0 0.0
    %120 = vmatmul.mubr.f32.gmra.mrb[0].mxu0 %v50
    %v121 = vpop.f32.mrb[0].mxu0
    %v122 = vadd.f32 %v47, %v121
    %v123 = vpop.f32.mrb[0].mxu0
    %124 = vmatprep.mubr.f32.mxu0 0.0
    %125 = vmatmul.mubr.f32.gmra.mrb[0].mxu0 %v53
    %v126 = vpop.f32.mrb[0].mxu0
    %v127 = vadd.f32 %v47, %v126
    %v128 = vpop.f32.mrb[0].mxu0
    %129 = vdwg.mxu0
    %vm130 = vcmask 261120
    %v132 = vsel %vm130, %v25, 0
    %134 = vmatprep.subr.mxu0 0.0
    %135 = vmatpush1.msra.mxu0 %v20
    %136 = vmatprep.subr.mxu0 0.0
    %137 = vmatpush1.msra.mxu0 %v21
    %138 = vmatprep.subr.mxu0 0.0
    %139 = vmatpush1.msra.mxu0 %v22
    %140 = vmatprep.subr.mxu0 0.0
    %141 = vmatpush1.msra.mxu0 %v23
    %142 = vmatprep.subr.mxu0 0.0
    %143 = vmatpush1.msra.mxu0 0.0
    %144 = vmatprep.subr.mxu0 0.0
    %145 = vmatpush1.msra.mxu0 0.0
    %146 = vmatprep.subr.mxu0 0.0
    %147 = vmatpush1.msra.mxu0 0.0
    %148 = vmatprep.subr.mxu0 0.0
    %149 = vmatpush1.msra.mxu0 0.0
    %150 = vmatprep.subr.mxu0 0.0
    %151 = vmatpush1.msra.mxu0 0.0
    %152 = vmatprep.subr.mxu0 0.0
    %153 = vmatpush1.msra.mxu0 0.0
    %154 = vmatprep.subr.mxu0 0.0
    %155 = vmatpush1.msra.mxu0 0.0
    %156 = vmatprep.subr.mxu0 0.0
    %157 = vmatpush1.msra.mxu0 0.0
    %158 = vmatprep.subr.mxu0 0.0
    %159 = vmatpush1.msra.mxu0 0.0
    %160 = vmatprep.subr.mxu0 0.0
    %161 = vmatpush1.msra.mxu0 0.0
    %162 = vmatprep.subr.mxu0 0.0
    %163 = vmatpush1.msra.mxu0 0.0
    %164 = vmatprep.subr.mxu0 0.0
    %165 = vmatpush1.msra.mxu0 0.0
    %166 = vmatprep.subr.mxu0 0.0
    %167 = vmatpush1.msra.mxu0 0.0
    %168 = vmatprep.subr.mxu0 0.0
    %169 = vmatpush1.msra.mxu0 0.0
    %170 = vmatprep.subr.mxu0 0.0
    %171 = vmatpush1.msra.mxu0 0.0
    %172 = vmatprep.subr.mxu0 0.0
    %173 = vmatpush1.msra.mxu0 0.0
    %174 = vmatprep.subr.mxu0 0.0
    %175 = vmatpush1.msra.mxu0 0.0
    %176 = vmatprep.subr.mxu0 0.0
    %177 = vmatpush1.msra.mxu0 0.0
    %178 = vmatprep.subr.mxu0 0.0
    %179 = vmatpush1.msra.mxu0 0.0
    %180 = vmatprep.subr.mxu0 0.0
    %181 = vmatpush1.msra.mxu0 0.0
    %182 = vmatprep.subr.mxu0 0.0
    %183 = vmatpush1.msra.mxu0 0.0
    %184 = vmatprep.subr.mxu0 0.0
    %185 = vmatpush1.msra.mxu0 0.0
    %186 = vmatprep.subr.mxu0 0.0
    %187 = vmatpush1.msra.mxu0 0.0
    %188 = vmatprep.subr.mxu0 0.0
    %189 = vmatpush1.msra.mxu0 0.0
    %190 = vmatprep.subr.mxu0 0.0
    %191 = vmatpush1.msra.mxu0 0.0
    %192 = vmatprep.subr.mxu0 0.0
    %193 = vmatpush1.msra.mxu0 0.0
    %194 = vmatprep.subr.mxu0 0.0
    %195 = vmatpush1.msra.mxu0 0.0
    %196 = vmatprep.subr.mxu0 0.0
    %197 = vmatpush1.msra.mxu0 0.0
    %198 = vmatprep.mubr.f32.mxu0 0.0
    %199 = vmatmul.mubr.f32.gmra.mrb[0].mxu0 %v132
    %v200 = vpop.f32.mrb[0].mxu0
    %v201 = vadd.f32 0.0, %v200
    %v202 = vpop.f32.mrb[0].mxu0
    %203 = vdwg.mxu0
    %v204 = vadd.f32 %v122, %v201
    %v205 = vxor.u32 %v204, 2147483648
    %v206 = vmul.f32 %v205, 1.442695
    %v207 = vpow.pop %v206
    %v208 = vadd.f32 %v207, 1.0
    %v209 = vrcp.pop %v208
    %v210 = vmul.f32 1.0, %v209
    %v211 = vtanh.pop %v204
    %213 = vrot.lane.b32.xlu0 %v26, 32
    %v214 = vpop.permute.xlu0 %213
    %v216 = vmul.f32 %v210, %v214
    %218 = vrot.lane.b32.xlu0 %v211, 32
    %v219 = vpop.permute.xlu0 %218
    %v221 = vmul.f32 %v210, %v219
    %223 = vrot.lane.b32.xlu0 %v221, 32
    %v224 = vpop.permute.xlu0 %223
    %v226 = vadd.f32 %v216, %v224
    %v227 = vtanh.pop %v226
    %229 = vrot.lane.b32.xlu0 %v227, 32
    %v230 = vpop.permute.xlu0 %229
    %v232 = vmul.f32 %v210, %v230
    %234 = vrot.lane.b32.xlu0 %v232, 64
    %v235 = vpop.permute.xlu0 %234
    %vm237 = vcmask 123904
    %238 = vst.msk [vmem:[#allocation2] sm:$0x3] %vm237, %v235
    %vm239 = vcmask 255104
    %240 = vst.msk [vmem:[#allocation2 + $0xe] sm:$0x3] %vm239, %v235
    %v241 = vsel %vm130, %v235, 0
    %243 = vmatprep.subr.mxu0 0.0
    %244 = vmatpush1.msra.mxu0 %v20
    %245 = vmatprep.subr.mxu0 0.0
    %246 = vmatpush1.msra.mxu0 %v21
    %247 = vmatprep.subr.mxu0 0.0
    %248 = vmatpush1.msra.mxu0 %v22
    %249 = vmatprep.subr.mxu0 0.0
    %250 = vmatpush1.msra.mxu0 %v23
    %251 = vmatprep.subr.mxu0 0.0
    %252 = vmatpush1.msra.mxu0 0.0
    %253 = vmatprep.subr.mxu0 0.0
    %254 = vmatpush1.msra.mxu0 0.0
    %255 = vmatprep.subr.mxu0 0.0
    %256 = vmatpush1.msra.mxu0 0.0
    %257 = vmatprep.subr.mxu0 0.0
    %258 = vmatpush1.msra.mxu0 0.0
    %259 = vmatprep.subr.mxu0 0.0
    %260 = vmatpush1.msra.mxu0 0.0
    %261 = vmatprep.subr.mxu0 0.0
    %262 = vmatpush1.msra.mxu0 0.0
    %263 = vmatprep.subr.mxu0 0.0
    %264 = vmatpush1.msra.mxu0 0.0
    %265 = vmatprep.subr.mxu0 0.0
    %266 = vmatpush1.msra.mxu0 0.0
    %267 = vmatprep.subr.mxu0 0.0
    %268 = vmatpush1.msra.mxu0 0.0
    %269 = vmatprep.subr.mxu0 0.0
    %270 = vmatpush1.msra.mxu0 0.0
    %271 = vmatprep.subr.mxu0 0.0
    %272 = vmatpush1.msra.mxu0 0.0
    %273 = vmatprep.subr.mxu0 0.0
    %274 = vmatpush1.msra.mxu0 0.0
    %275 = vmatprep.subr.mxu0 0.0
    %276 = vmatpush1.msra.mxu0 0.0
    %277 = vmatprep.subr.mxu0 0.0
    %278 = vmatpush1.msra.mxu0 0.0
    %279 = vmatprep.subr.mxu0 0.0
    %280 = vmatpush1.msra.mxu0 0.0
    %281 = vmatprep.subr.mxu0 0.0
    %282 = vmatpush1.msra.mxu0 0.0
    %283 = vmatprep.subr.mxu0 0.0
    %284 = vmatpush1.msra.mxu0 0.0
    %285 = vmatprep.subr.mxu0 0.0
    %286 = vmatpush1.msra.mxu0 0.0
    %287 = vmatprep.subr.mxu0 0.0
    %288 = vmatpush1.msra.mxu0 0.0
    %289 = vmatprep.subr.mxu0 0.0
    %290 = vmatpush1.msra.mxu0 0.0
    %291 = vmatprep.subr.mxu0 0.0
    %292 = vmatpush1.msra.mxu0 0.0
    %293 = vmatprep.subr.mxu0 0.0
    %294 = vmatpush1.msra.mxu0 0.0
    %295 = vmatprep.subr.mxu0 0.0
    %296 = vmatpush1.msra.mxu0 0.0
    %297 = vmatprep.subr.mxu0 0.0
    %298 = vmatpush1.msra.mxu0 0.0
    %299 = vmatprep.subr.mxu0 0.0
    %300 = vmatpush1.msra.mxu0 0.0
    %301 = vmatprep.subr.mxu0 0.0
    %302 = vmatpush1.msra.mxu0 0.0
    %303 = vmatprep.subr.mxu0 0.0
    %304 = vmatpush1.msra.mxu0 0.0
    %305 = vmatprep.subr.mxu0 0.0
    %306 = vmatpush1.msra.mxu0 0.0
    %307 = vmatprep.mubr.f32.mxu0 0.0
    %308 = vmatmul.mubr.f32.gmra.mrb[0].mxu0 %v241
    %v309 = vpop.f32.mrb[0].mxu0
    %v310 = vadd.f32 0.0, %v309
    %v311 = vpop.f32.mrb[0].mxu0
    %312 = vdwg.mxu0
    %v314 = vrot.slane %v310, 6
    %v316 = vadd.f32 %v122, %v314
    %v317 = vxor.u32 %v316, 2147483648
    %v318 = vmul.f32 %v317, 1.442695
    %v319 = vpow.pop %v318
    %v320 = vadd.f32 %v319, 1.0
    %v321 = vrcp.pop %v320
    %v322 = vmul.f32 1.0, %v321
    %v323 = vtanh.pop %v316
    %v325 = vrot.slane %v226, 6
    %v327 = vmul.f32 %v322, %v325
    %329 = vrot.lane.b32.xlu0 %v323, 32
    %v330 = vpop.permute.xlu0 %329
    %v332 = vmul.f32 %v322, %v330
    %334 = vrot.lane.b32.xlu0 %v332, 32
    %v335 = vpop.permute.xlu0 %334
    %v337 = vadd.f32 %v327, %v335
    %v338 = vtanh.pop %v337
    %340 = vrot.lane.b32.xlu0 %v338, 32
    %v341 = vpop.permute.xlu0 %340
    %v343 = vmul.f32 %v322, %v341
    %345 = vrot.lane.b32.xlu0 %v343, 64
    %v346 = vpop.permute.xlu0 %345
    %vm348 = vcmask 125954
    %349 = vst.msk [vmem:[#allocation2] sm:$0xc] %vm348, %v346
    %vm350 = vcmask 257154
    %351 = vst.msk [vmem:[#allocation2 + $0xa] sm:$0xc] %vm350, %v346
    %v352 = vrot.slane %v343, 2
    %353 = vrot.lane.b32.xlu0 %v352, 64
    %v354 = vpop.permute.xlu0 %353
    %v355 = vsel %vm130, %v354, 0
    %357 = vmatprep.subr.mxu0 0.0
    %358 = vmatpush1.msra.mxu0 %v20
    %359 = vmatprep.subr.mxu0 0.0
    %360 = vmatpush1.msra.mxu0 %v21
    %361 = vmatprep.subr.mxu0 0.0
    %362 = vmatpush1.msra.mxu0 %v22
    %363 = vmatprep.subr.mxu0 0.0
    %364 = vmatpush1.msra.mxu0 %v23
    %365 = vmatprep.subr.mxu0 0.0
    %366 = vmatpush1.msra.mxu0 0.0
    %367 = vmatprep.subr.mxu0 0.0
    %368 = vmatpush1.msra.mxu0 0.0
    %369 = vmatprep.subr.mxu0 0.0
    %370 = vmatpush1.msra.mxu0 0.0
    %371 = vmatprep.subr.mxu0 0.0
    %372 = vmatpush1.msra.mxu0 0.0
    %373 = vmatprep.subr.mxu0 0.0
    %374 = vmatpush1.msra.mxu0 0.0
    %375 = vmatprep.subr.mxu0 0.0
    %376 = vmatpush1.msra.mxu0 0.0
    %377 = vmatprep.subr.mxu0 0.0
    %378 = vmatpush1.msra.mxu0 0.0
    %379 = vmatprep.subr.mxu0 0.0
    %380 = vmatpush1.msra.mxu0 0.0
    %381 = vmatprep.subr.mxu0 0.0
    %382 = vmatpush1.msra.mxu0 0.0
    %383 = vmatprep.subr.mxu0 0.0
    %384 = vmatpush1.msra.mxu0 0.0
    %385 = vmatprep.subr.mxu0 0.0
    %386 = vmatpush1.msra.mxu0 0.0
    %387 = vmatprep.subr.mxu0 0.0
    %388 = vmatpush1.msra.mxu0 0.0
    %389 = vmatprep.subr.mxu0 0.0
    %390 = vmatpush1.msra.mxu0 0.0
    %391 = vmatprep.subr.mxu0 0.0
    %392 = vmatpush1.msra.mxu0 0.0
    %393 = vmatprep.subr.mxu0 0.0
    %394 = vmatpush1.msra.mxu0 0.0
    %395 = vmatprep.subr.mxu0 0.0
    %396 = vmatpush1.msra.mxu0 0.0
    %397 = vmatprep.subr.mxu0 0.0
    %398 = vmatpush1.msra.mxu0 0.0
    %399 = vmatprep.subr.mxu0 0.0
    %400 = vmatpush1.msra.mxu0 0.0
    %401 = vmatprep.subr.mxu0 0.0
    %402 = vmatpush1.msra.mxu0 0.0
    %403 = vmatprep.subr.mxu0 0.0
    %404 = vmatpush1.msra.mxu0 0.0
    %405 = vmatprep.subr.mxu0 0.0
    %406 = vmatpush1.msra.mxu0 0.0
    %407 = vmatprep.subr.mxu0 0.0
    %408 = vmatpush1.msra.mxu0 0.0
    %409 = vmatprep.subr.mxu0 0.0
    %410 = vmatpush1.msra.mxu0 0.0
    %411 = vmatprep.subr.mxu0 0.0
    %412 = vmatpush1.msra.mxu0 0.0
    %413 = vmatprep.subr.mxu0 0.0
    %414 = vmatpush1.msra.mxu0 0.0
    %415 = vmatprep.subr.mxu0 0.0
    %416 = vmatpush1.msra.mxu0 0.0
    %417 = vmatprep.subr.mxu0 0.0
    %418 = vmatpush1.msra.mxu0 0.0
    %419 = vmatprep.subr.mxu0 0.0
    %420 = vmatpush1.msra.mxu0 0.0
    %421 = vmatprep.mubr.f32.mxu0 0.0
    %422 = vmatmul.mubr.f32.gmra.mrb[0].mxu0 %v355
    %v423 = vpop.f32.mrb[0].mxu0
    %v424 = vadd.f32 0.0, %v423
    %v425 = vpop.f32.mrb[0].mxu0
    %426 = vdwg.mxu0
    %v428 = vrot.slane %v424, 4
    %v430 = vadd.f32 %v122, %v428
    %v431 = vxor.u32 %v430, 2147483648
    %v432 = vmul.f32 %v431, 1.442695
    %v433 = vpow.pop %v432
    %v434 = vadd.f32 %v433, 1.0
    %v435 = vrcp.pop %v434
    %v436 = vmul.f32 1.0, %v435
    %v437 = vtanh.pop %v430
    %v439 = vrot.slane %v337, 6
    %v441 = vmul.f32 %v436, %v439
    %443 = vrot.lane.b32.xlu0 %v437, 32
    %v444 = vpop.permute.xlu0 %443
    %v446 = vmul.f32 %v436, %v444
    %448 = vrot.lane.b32.xlu0 %v446, 32
    %v449 = vpop.permute.xlu0 %448
    %v451 = vadd.f32 %v441, %v449
    %v452 = vtanh.pop %v451
    %454 = vrot.lane.b32.xlu0 %v452, 32
    %v455 = vpop.permute.xlu0 %454
    %v457 = vmul.f32 %v436, %v455
    %459 = vrot.lane.b32.xlu0 %v457, 64
    %v460 = vpop.permute.xlu0 %459
    %vm462 = vcmask 128004
    %463 = vst.msk [vmem:[#allocation2] sm:$0x30] %vm462, %v460
    %vm464 = vcmask 259204
    %465 = vst.msk [vmem:[#allocation2 + $0x6] sm:$0x30] %vm464, %v460
    %v466 = vrot.slane %v457, 4
    %467 = vrot.lane.b32.xlu0 %v466, 64
    %v468 = vpop.permute.xlu0 %467
    %v469 = vsel %vm130, %v468, 0
    %471 = vmatprep.subr.mxu0 0.0
    %472 = vmatpush1.msra.mxu0 %v20
    %473 = vmatprep.subr.mxu0 0.0
    %474 = vmatpush1.msra.mxu0 %v21
    %475 = vmatprep.subr.mxu0 0.0
    %476 = vmatpush1.msra.mxu0 %v22
    %477 = vmatprep.subr.mxu0 0.0
    %478 = vmatpush1.msra.mxu0 %v23
    %479 = vmatprep.subr.mxu0 0.0
    %480 = vmatpush1.msra.mxu0 0.0
    %481 = vmatprep.subr.mxu0 0.0
    %482 = vmatpush1.msra.mxu0 0.0
    %483 = vmatprep.subr.mxu0 0.0
    %484 = vmatpush1.msra.mxu0 0.0
    %485 = vmatprep.subr.mxu0 0.0
    %486 = vmatpush1.msra.mxu0 0.0
    %487 = vmatprep.subr.mxu0 0.0
    %488 = vmatpush1.msra.mxu0 0.0
    %489 = vmatprep.subr.mxu0 0.0
    %490 = vmatpush1.msra.mxu0 0.0
    %491 = vmatprep.subr.mxu0 0.0
    %492 = vmatpush1.msra.mxu0 0.0
    %493 = vmatprep.subr.mxu0 0.0
    %494 = vmatpush1.msra.mxu0 0.0
    %495 = vmatprep.subr.mxu0 0.0
    %496 = vmatpush1.msra.mxu0 0.0
    %497 = vmatprep.subr.mxu0 0.0
    %498 = vmatpush1.msra.mxu0 0.0
    %499 = vmatprep.subr.mxu0 0.0
    %500 = vmatpush1.msra.mxu0 0.0
    %501 = vmatprep.subr.mxu0 0.0
    %502 = vmatpush1.msra.mxu0 0.0
    %503 = vmatprep.subr.mxu0 0.0
    %504 = vmatpush1.msra.mxu0 0.0
    %505 = vmatprep.subr.mxu0 0.0
    %506 = vmatpush1.msra.mxu0 0.0
    %507 = vmatprep.subr.mxu0 0.0
    %508 = vmatpush1.msra.mxu0 0.0
    %509 = vmatprep.subr.mxu0 0.0
    %510 = vmatpush1.msra.mxu0 0.0
    %511 = vmatprep.subr.mxu0 0.0
    %512 = vmatpush1.msra.mxu0 0.0
    %513 = vmatprep.subr.mxu0 0.0
    %514 = vmatpush1.msra.mxu0 0.0
    %515 = vmatprep.subr.mxu0 0.0
    %516 = vmatpush1.msra.mxu0 0.0
    %517 = vmatprep.subr.mxu0 0.0
    %518 = vmatpush1.msra.mxu0 0.0
    %519 = vmatprep.subr.mxu0 0.0
    %520 = vmatpush1.msra.mxu0 0.0
    %521 = vmatprep.subr.mxu0 0.0
    %522 = vmatpush1.msra.mxu0 0.0
    %523 = vmatprep.subr.mxu0 0.0
    %524 = vmatpush1.msra.mxu0 0.0
    %525 = vmatprep.subr.mxu0 0.0
    %526 = vmatpush1.msra.mxu0 0.0
    %527 = vmatprep.subr.mxu0 0.0
    %528 = vmatpush1.msra.mxu0 0.0
    %529 = vmatprep.subr.mxu0 0.0
    %530 = vmatpush1.msra.mxu0 0.0
    %531 = vmatprep.subr.mxu0 0.0
    %532 = vmatpush1.msra.mxu0 0.0
    %533 = vmatprep.subr.mxu0 0.0
    %534 = vmatpush1.msra.mxu0 0.0
    %535 = vmatprep.mubr.f32.mxu0 0.0
    %536 = vmatmul.mubr.f32.gmra.mrb[0].mxu0 %v469
    %v537 = vpop.f32.mrb[0].mxu0
    %v538 = vadd.f32 0.0, %v537
    %v539 = vpop.f32.mrb[0].mxu0
    %540 = vdwg.mxu0
    %v542 = vrot.slane %v538, 2
    %v544 = vadd.f32 %v122, %v542
    %v545 = vxor.u32 %v544, 2147483648
    %v546 = vmul.f32 %v545, 1.442695
    %v547 = vpow.pop %v546
    %v548 = vadd.f32 %v547, 1.0
    %v549 = vrcp.pop %v548
    %v550 = vmul.f32 1.0, %v549
    %v551 = vtanh.pop %v544
    %v553 = vrot.slane %v451, 6
    %v555 = vmul.f32 %v550, %v553
    %557 = vrot.lane.b32.xlu0 %v551, 32
    %v558 = vpop.permute.xlu0 %557
    %v560 = vmul.f32 %v550, %v558
    %562 = vrot.lane.b32.xlu0 %v560, 32
    %v563 = vpop.permute.xlu0 %562
    %v565 = vadd.f32 %v555, %v563
    %v566 = vtanh.pop %v565
    %568 = vrot.lane.b32.xlu0 %v566, 32
    %v569 = vpop.permute.xlu0 %568
    %v571 = vmul.f32 %v550, %v569
    %573 = vrot.lane.b32.xlu0 %v571, 64
    %v574 = vpop.permute.xlu0 %573
    %vm576 = vcmask 130054
    %577 = vst.msk [vmem:[#allocation2] sm:$0xc0] %vm576, %v574
    %vm578 = vcmask 261254
    %579 = vst.msk [vmem:[#allocation2 + $0x2] sm:$0xc0] %vm578, %v574
    %v580 = vrot.slane %v571, 6
    %581 = vrot.lane.b32.xlu0 %v580, 64
    %v582 = vpop.permute.xlu0 %581
    %v583 = vsel %vm130, %v582, 0
    %585 = vmatprep.subr.mxu0 0.0
    %586 = vmatpush1.msra.mxu0 %v20
    %587 = vmatprep.subr.mxu0 0.0
    %588 = vmatpush1.msra.mxu0 %v21
    %589 = vmatprep.subr.mxu0 0.0
    %590 = vmatpush1.msra.mxu0 %v22
    %591 = vmatprep.subr.mxu0 0.0
    %592 = vmatpush1.msra.mxu0 %v23
    %593 = vmatprep.subr.mxu0 0.0
    %594 = vmatpush1.msra.mxu0 0.0
    %595 = vmatprep.subr.mxu0 0.0
    %596 = vmatpush1.msra.mxu0 0.0
    %597 = vmatprep.subr.mxu0 0.0
    %598 = vmatpush1.msra.mxu0 0.0
    %599 = vmatprep.subr.mxu0 0.0
    %600 = vmatpush1.msra.mxu0 0.0
    %601 = vmatprep.subr.mxu0 0.0
    %602 = vmatpush1.msra.mxu0 0.0
    %603 = vmatprep.subr.mxu0 0.0
    %604 = vmatpush1.msra.mxu0 0.0
    %605 = vmatprep.subr.mxu0 0.0
    %606 = vmatpush1.msra.mxu0 0.0
    %607 = vmatprep.subr.mxu0 0.0
    %608 = vmatpush1.msra.mxu0 0.0
    %609 = vmatprep.subr.mxu0 0.0
    %610 = vmatpush1.msra.mxu0 0.0
    %611 = vmatprep.subr.mxu0 0.0
    %612 = vmatpush1.msra.mxu0 0.0
    %613 = vmatprep.subr.mxu0 0.0
    %614 = vmatpush1.msra.mxu0 0.0
    %615 = vmatprep.subr.mxu0 0.0
    %616 = vmatpush1.msra.mxu0 0.0
    %617 = vmatprep.subr.mxu0 0.0
    %618 = vmatpush1.msra.mxu0 0.0
    %619 = vmatprep.subr.mxu0 0.0
    %620 = vmatpush1.msra.mxu0 0.0
    %621 = vmatprep.subr.mxu0 0.0
    %622 = vmatpush1.msra.mxu0 0.0
    %623 = vmatprep.subr.mxu0 0.0
    %624 = vmatpush1.msra.mxu0 0.0
    %625 = vmatprep.subr.mxu0 0.0
    %626 = vmatpush1.msra.mxu0 0.0
    %627 = vmatprep.subr.mxu0 0.0
    %628 = vmatpush1.msra.mxu0 0.0
    %629 = vmatprep.subr.mxu0 0.0
    %630 = vmatpush1.msra.mxu0 0.0
    %631 = vmatprep.subr.mxu0 0.0
    %632 = vmatpush1.msra.mxu0 0.0
    %633 = vmatprep.subr.mxu0 0.0
    %634 = vmatpush1.msra.mxu0 0.0
    %635 = vmatprep.subr.mxu0 0.0
    %636 = vmatpush1.msra.mxu0 0.0
    %637 = vmatprep.subr.mxu0 0.0
    %638 = vmatpush1.msra.mxu0 0.0
    %639 = vmatprep.subr.mxu0 0.0
    %640 = vmatpush1.msra.mxu0 0.0
    %641 = vmatprep.subr.mxu0 0.0
    %642 = vmatpush1.msra.mxu0 0.0
    %643 = vmatprep.subr.mxu0 0.0
    %644 = vmatpush1.msra.mxu0 0.0
    %645 = vmatprep.subr.mxu0 0.0
    %646 = vmatpush1.msra.mxu0 0.0
    %647 = vmatprep.subr.mxu0 0.0
    %648 = vmatpush1.msra.mxu0 0.0
    %649 = vmatprep.mubr.f32.mxu0 0.0
    %650 = vmatmul.mubr.f32.gmra.mrb[0].mxu0 %v583
    %v651 = vpop.f32.mrb[0].mxu0
    %v652 = vadd.f32 0.0, %v651
    %v653 = vpop.f32.mrb[0].mxu0
    %654 = vdwg.mxu0
    %v655 = vadd.f32 %v127, %v652
    %v656 = vxor.u32 %v655, 2147483648
    %v657 = vmul.f32 %v656, 1.442695
    %v658 = vpow.pop %v657
    %v659 = vadd.f32 %v658, 1.0
    %v660 = vrcp.pop %v659
    %v661 = vmul.f32 1.0, %v660
    %v662 = vtanh.pop %v655
    %v664 = vrot.slane %v565, 6
    %v666 = vmul.f32 %v661, %v664
    %668 = vrot.lane.b32.xlu0 %v662, 32
    %v669 = vpop.permute.xlu0 %668
    %v671 = vmul.f32 %v661, %v669
    %673 = vrot.lane.b32.xlu0 %v671, 32
    %v674 = vpop.permute.xlu0 %673
    %v676 = vadd.f32 %v666, %v674
    %v677 = vtanh.pop %v676
    %679 = vrot.lane.b32.xlu0 %v677, 32
    %v680 = vpop.permute.xlu0 %679
    %v682 = vmul.f32 %v661, %v680
    %684 = vrot.lane.b32.xlu0 %v682, 64
    %v685 = vpop.permute.xlu0 %684
    %687 = vst.msk [vmem:[#allocation2 + $0x8] sm:$0x3] %vm237, %v685
    %688 = vst.msk [vmem:[#allocation2 + $0x6] sm:$0x3] %vm239, %v685
    %v689 = vsel %vm130, %v685, 0
    %691 = vmatprep.subr.mxu0 0.0
    %692 = vmatpush1.msra.mxu0 %v20
    %693 = vmatprep.subr.mxu0 0.0
    %694 = vmatpush1.msra.mxu0 %v21
    %695 = vmatprep.subr.mxu0 0.0
    %696 = vmatpush1.msra.mxu0 %v22
    %697 = vmatprep.subr.mxu0 0.0
    %698 = vmatpush1.msra.mxu0 %v23
    %699 = vmatprep.subr.mxu0 0.0
    %700 = vmatpush1.msra.mxu0 0.0
    %701 = vmatprep.subr.mxu0 0.0
    %702 = vmatpush1.msra.mxu0 0.0
    %703 = vmatprep.subr.mxu0 0.0
    %704 = vmatpush1.msra.mxu0 0.0
    %705 = vmatprep.subr.mxu0 0.0
    %706 = vmatpush1.msra.mxu0 0.0
    %707 = vmatprep.subr.mxu0 0.0
    %708 = vmatpush1.msra.mxu0 0.0
    %709 = vmatprep.subr.mxu0 0.0
    %710 = vmatpush1.msra.mxu0 0.0
    %711 = vmatprep.subr.mxu0 0.0
    %712 = vmatpush1.msra.mxu0 0.0
    %713 = vmatprep.subr.mxu0 0.0
    %714 = vmatpush1.msra.mxu0 0.0
    %715 = vmatprep.subr.mxu0 0.0
    %716 = vmatpush1.msra.mxu0 0.0
    %717 = vmatprep.subr.mxu0 0.0
    %718 = vmatpush1.msra.mxu0 0.0
    %719 = vmatprep.subr.mxu0 0.0
    %720 = vmatpush1.msra.mxu0 0.0
    %721 = vmatprep.subr.mxu0 0.0
    %722 = vmatpush1.msra.mxu0 0.0
    %723 = vmatprep.subr.mxu0 0.0
    %724 = vmatpush1.msra.mxu0 0.0
    %725 = vmatprep.subr.mxu0 0.0
    %726 = vmatpush1.msra.mxu0 0.0
    %727 = vmatprep.subr.mxu0 0.0
    %728 = vmatpush1.msra.mxu0 0.0
    %729 = vmatprep.subr.mxu0 0.0
    %730 = vmatpush1.msra.mxu0 0.0
    %731 = vmatprep.subr.mxu0 0.0
    %732 = vmatpush1.msra.mxu0 0.0
    %733 = vmatprep.subr.mxu0 0.0
    %734 = vmatpush1.msra.mxu0 0.0
    %735 = vmatprep.subr.mxu0 0.0
    %736 = vmatpush1.msra.mxu0 0.0
    %737 = vmatprep.subr.mxu0 0.0
    %738 = vmatpush1.msra.mxu0 0.0
    %739 = vmatprep.subr.mxu0 0.0
    %740 = vmatpush1.msra.mxu0 0.0
    %741 = vmatprep.subr.mxu0 0.0
    %742 = vmatpush1.msra.mxu0 0.0
    %743 = vmatprep.subr.mxu0 0.0
    %744 = vmatpush1.msra.mxu0 0.0
    %745 = vmatprep.subr.mxu0 0.0
    %746 = vmatpush1.msra.mxu0 0.0
    %747 = vmatprep.subr.mxu0 0.0
    %748 = vmatpush1.msra.mxu0 0.0
    %749 = vmatprep.subr.mxu0 0.0
    %750 = vmatpush1.msra.mxu0 0.0
    %751 = vmatprep.subr.mxu0 0.0
    %752 = vmatpush1.msra.mxu0 0.0
    %753 = vmatprep.subr.mxu0 0.0
    %754 = vmatpush1.msra.mxu0 0.0
    %755 = vmatprep.mubr.f32.mxu0 0.0
    %756 = vmatmul.mubr.f32.gmra.mrb[0].mxu0 %v689
    %v757 = vpop.f32.mrb[0].mxu0
    %v758 = vadd.f32 0.0, %v757
    %v759 = vpop.f32.mrb[0].mxu0
    %760 = vdwg.mxu0
    %v762 = vrot.slane %v758, 6
    %v764 = vadd.f32 %v127, %v762
    %v765 = vxor.u32 %v764, 2147483648
    %v766 = vmul.f32 %v765, 1.442695
    %v767 = vpow.pop %v766
    %v768 = vadd.f32 %v767, 1.0
    %v769 = vrcp.pop %v768
    %v770 = vmul.f32 1.0, %v769
    %v771 = vtanh.pop %v764
    %v773 = vrot.slane %v676, 6
    %v775 = vmul.f32 %v770, %v773
    %777 = vrot.lane.b32.xlu0 %v771, 32
    %v778 = vpop.permute.xlu0 %777
    %v780 = vmul.f32 %v770, %v778
    %782 = vrot.lane.b32.xlu0 %v780, 32
    %v783 = vpop.permute.xlu0 %782
    %v785 = vadd.f32 %v775, %v783
    %v786 = vtanh.pop %v785
    %788 = vrot.lane.b32.xlu0 %v786, 32
    %v789 = vpop.permute.xlu0 %788
    %v791 = vmul.f32 %v770, %v789
    %793 = vrot.lane.b32.xlu0 %v791, 64
    %v794 = vpop.permute.xlu0 %793
    %796 = vst.msk [vmem:[#allocation2 + $0x8] sm:$0xc] %vm348, %v794
    %797 = vst.msk [vmem:[#allocation2 + $0x2] sm:$0xc] %vm350, %v794
    %v798 = vrot.slane %v791, 2
    %799 = vrot.lane.b32.xlu0 %v798, 64
    %v800 = vpop.permute.xlu0 %799
    %v801 = vsel %vm130, %v800, 0
    %803 = vmatprep.subr.mxu0 0.0
    %804 = vmatpush1.msra.mxu0 %v20
    %805 = vmatprep.subr.mxu0 0.0
    %806 = vmatpush1.msra.mxu0 %v21
    %807 = vmatprep.subr.mxu0 0.0
    %808 = vmatpush1.msra.mxu0 %v22
    %809 = vmatprep.subr.mxu0 0.0
    %810 = vmatpush1.msra.mxu0 %v23
    %811 = vmatprep.subr.mxu0 0.0
    %812 = vmatpush1.msra.mxu0 0.0
    %813 = vmatprep.subr.mxu0 0.0
    %814 = vmatpush1.msra.mxu0 0.0
    %815 = vmatprep.subr.mxu0 0.0
    %816 = vmatpush1.msra.mxu0 0.0
    %817 = vmatprep.subr.mxu0 0.0
    %818 = vmatpush1.msra.mxu0 0.0
    %819 = vmatprep.subr.mxu0 0.0
    %820 = vmatpush1.msra.mxu0 0.0
    %821 = vmatprep.subr.mxu0 0.0
    %822 = vmatpush1.msra.mxu0 0.0
    %823 = vmatprep.subr.mxu0 0.0
    %824 = vmatpush1.msra.mxu0 0.0
    %825 = vmatprep.subr.mxu0 0.0
    %826 = vmatpush1.msra.mxu0 0.0
    %827 = vmatprep.subr.mxu0 0.0
    %828 = vmatpush1.msra.mxu0 0.0
    %829 = vmatprep.subr.mxu0 0.0
    %830 = vmatpush1.msra.mxu0 0.0
    %831 = vmatprep.subr.mxu0 0.0
    %832 = vmatpush1.msra.mxu0 0.0
    %833 = vmatprep.subr.mxu0 0.0
    %834 = vmatpush1.msra.mxu0 0.0
    %835 = vmatprep.subr.mxu0 0.0
    %836 = vmatpush1.msra.mxu0 0.0
    %837 = vmatprep.subr.mxu0 0.0
    %838 = vmatpush1.msra.mxu0 0.0
    %839 = vmatprep.subr.mxu0 0.0
    %840 = vmatpush1.msra.mxu0 0.0
    %841 = vmatprep.subr.mxu0 0.0
    %842 = vmatpush1.msra.mxu0 0.0
    %843 = vmatprep.subr.mxu0 0.0
    %844 = vmatpush1.msra.mxu0 0.0
    %845 = vmatprep.subr.mxu0 0.0
    %846 = vmatpush1.msra.mxu0 0.0
    %847 = vmatprep.subr.mxu0 0.0
    %848 = vmatpush1.msra.mxu0 0.0
    %849 = vmatprep.subr.mxu0 0.0
    %850 = vmatpush1.msra.mxu0 0.0
    %851 = vmatprep.subr.mxu0 0.0
    %852 = vmatpush1.msra.mxu0 0.0
    %853 = vmatprep.subr.mxu0 0.0
    %854 = vmatpush1.msra.mxu0 0.0
    %855 = vmatprep.subr.mxu0 0.0
    %856 = vmatpush1.msra.mxu0 0.0
    %857 = vmatprep.subr.mxu0 0.0
    %858 = vmatpush1.msra.mxu0 0.0
    %859 = vmatprep.subr.mxu0 0.0
    %860 = vmatpush1.msra.mxu0 0.0
    %861 = vmatprep.subr.mxu0 0.0
    %862 = vmatpush1.msra.mxu0 0.0
    %863 = vmatprep.subr.mxu0 0.0
    %864 = vmatpush1.msra.mxu0 0.0
    %865 = vmatprep.subr.mxu0 0.0
    %866 = vmatpush1.msra.mxu0 0.0
    %867 = vmatprep.mubr.f32.mxu0 0.0
    %868 = vmatmul.mubr.f32.gmra.mrb[0].mxu0 %v801
    %v869 = vpop.f32.mrb[0].mxu0
    %v870 = vadd.f32 0.0, %v869
    %v871 = vpop.f32.mrb[0].mxu0
    %872 = vdwg.mxu0
    %v874 = vrot.slane %v870, 4
    %v876 = vadd.f32 %v127, %v874
    %v877 = vxor.u32 %v876, 2147483648
    %v878 = vmul.f32 %v877, 1.442695
    %v879 = vpow.pop %v878
    %v880 = vadd.f32 %v879, 1.0
    %v881 = vrcp.pop %v880
    %v882 = vmul.f32 1.0, %v881
    %v883 = vtanh.pop %v876
    %v885 = vrot.slane %v785, 6
    %v887 = vmul.f32 %v882, %v885
    %889 = vrot.lane.b32.xlu0 %v883, 32
    %v890 = vpop.permute.xlu0 %889
    %v892 = vmul.f32 %v882, %v890
    %894 = vrot.lane.b32.xlu0 %v892, 32
    %v895 = vpop.permute.xlu0 %894
    %v897 = vadd.f32 %v887, %v895
    %v898 = vtanh.pop %v897
    %900 = vrot.lane.b32.xlu0 %v898, 32
    %v901 = vpop.permute.xlu0 %900
    %v903 = vmul.f32 %v882, %v901
    %905 = vrot.lane.b32.xlu0 %v903, 64
    %v906 = vpop.permute.xlu0 %905
    %908 = vst.msk [vmem:[#allocation2 + $0x8] sm:$0x30] %vm462, %v906
    %909 = vst.msk [vmem:[#allocation2 - $0x2] sm:$0x30] %vm464, %v906
    %v910 = vrot.slane %v903, 4
    %911 = vrot.lane.b32.xlu0 %v910, 64
    %v912 = vpop.permute.xlu0 %911
    %v913 = vsel %vm130, %v912, 0
    %915 = vmatprep.subr.mxu0 0.0
    %916 = vmatpush1.msra.mxu0 %v20
    %917 = vmatprep.subr.mxu0 0.0
    %918 = vmatpush1.msra.mxu0 %v21
    %919 = vmatprep.subr.mxu0 0.0
    %920 = vmatpush1.msra.mxu0 %v22
    %921 = vmatprep.subr.mxu0 0.0
    %922 = vmatpush1.msra.mxu0 %v23
    %923 = vmatprep.subr.mxu0 0.0
    %924 = vmatpush1.msra.mxu0 0.0
    %925 = vmatprep.subr.mxu0 0.0
    %926 = vmatpush1.msra.mxu0 0.0
    %927 = vmatprep.subr.mxu0 0.0
    %928 = vmatpush1.msra.mxu0 0.0
    %929 = vmatprep.subr.mxu0 0.0
    %930 = vmatpush1.msra.mxu0 0.0
    %931 = vmatprep.subr.mxu0 0.0
    %932 = vmatpush1.msra.mxu0 0.0
    %933 = vmatprep.subr.mxu0 0.0
    %934 = vmatpush1.msra.mxu0 0.0
    %935 = vmatprep.subr.mxu0 0.0
    %936 = vmatpush1.msra.mxu0 0.0
    %937 = vmatprep.subr.mxu0 0.0
    %938 = vmatpush1.msra.mxu0 0.0
    %939 = vmatprep.subr.mxu0 0.0
    %940 = vmatpush1.msra.mxu0 0.0
    %941 = vmatprep.subr.mxu0 0.0
    %942 = vmatpush1.msra.mxu0 0.0
    %943 = vmatprep.subr.mxu0 0.0
    %944 = vmatpush1.msra.mxu0 0.0
    %945 = vmatprep.subr.mxu0 0.0
    %946 = vmatpush1.msra.mxu0 0.0
    %947 = vmatprep.subr.mxu0 0.0
    %948 = vmatpush1.msra.mxu0 0.0
    %949 = vmatprep.subr.mxu0 0.0
    %950 = vmatpush1.msra.mxu0 0.0
    %951 = vmatprep.subr.mxu0 0.0
    %952 = vmatpush1.msra.mxu0 0.0
    %953 = vmatprep.subr.mxu0 0.0
    %954 = vmatpush1.msra.mxu0 0.0
    %955 = vmatprep.subr.mxu0 0.0
    %956 = vmatpush1.msra.mxu0 0.0
    %957 = vmatprep.subr.mxu0 0.0
    %958 = vmatpush1.msra.mxu0 0.0
    %959 = vmatprep.subr.mxu0 0.0
    %960 = vmatpush1.msra.mxu0 0.0
    %961 = vmatprep.subr.mxu0 0.0
    %962 = vmatpush1.msra.mxu0 0.0
    %963 = vmatprep.subr.mxu0 0.0
    %964 = vmatpush1.msra.mxu0 0.0
    %965 = vmatprep.subr.mxu0 0.0
    %966 = vmatpush1.msra.mxu0 0.0
    %967 = vmatprep.subr.mxu0 0.0
    %968 = vmatpush1.msra.mxu0 0.0
    %969 = vmatprep.subr.mxu0 0.0
    %970 = vmatpush1.msra.mxu0 0.0
    %971 = vmatprep.subr.mxu0 0.0
    %972 = vmatpush1.msra.mxu0 0.0
    %973 = vmatprep.subr.mxu0 0.0
    %974 = vmatpush1.msra.mxu0 0.0
    %975 = vmatprep.subr.mxu0 0.0
    %976 = vmatpush1.msra.mxu0 0.0
    %977 = vmatprep.subr.mxu0 0.0
    %978 = vmatpush1.msra.mxu0 0.0
    %979 = vmatprep.mubr.f32.mxu0 0.0
    %980 = vmatmul.mubr.f32.gmra.mrb[0].mxu0 %v913
    %v981 = vpop.f32.mrb[0].mxu0
    %v982 = vadd.f32 0.0, %v981
    %v983 = vpop.f32.mrb[0].mxu0
    %984 = vdwg.mxu0
    %v986 = vrot.slane %v982, 2
    %v988 = vadd.f32 %v127, %v986
    %v989 = vxor.u32 %v988, 2147483648
    %v990 = vmul.f32 %v989, 1.442695
    %v991 = vpow.pop %v990
    %v992 = vadd.f32 %v991, 1.0
    %v993 = vrcp.pop %v992
    %v994 = vmul.f32 1.0, %v993
    %v995 = vtanh.pop %v988
    %v997 = vrot.slane %v897, 6
    %v999 = vmul.f32 %v994, %v997
    %1001 = vrot.lane.b32.xlu0 %v995, 32
    %v1002 = vpop.permute.xlu0 %1001
    %v1004 = vmul.f32 %v994, %v1002
    %1006 = vrot.lane.b32.xlu0 %v1004, 32
    %v1007 = vpop.permute.xlu0 %1006
    %v1009 = vadd.f32 %v999, %v1007
    %v1010 = vtanh.pop %v1009
    %1012 = vrot.lane.b32.xlu0 %v1010, 32
    %v1013 = vpop.permute.xlu0 %1012
    %v1015 = vmul.f32 %v994, %v1013
    %1017 = vrot.lane.b32.xlu0 %v1015, 64
    %v1018 = vpop.permute.xlu0 %1017
    %1020 = vst.msk [vmem:[#allocation2 + $0x8] sm:$0xc0] %vm576, %v1018
    %1021 = vst.msk [vmem:[#allocation2 - $0x6] sm:$0xc0] %vm578, %v1018
    %v1022 = vld [vmem:[#allocation2] sm:$0xff]
    %v1023 = vld [vmem:[#allocation2 + $0x8] sm:$0xff]
    %v1024 = vlaneseq
    %v1025 = vshrl.u32 %v1024, 7
    %v1026 = vsub.s32 0, %v1025
    %v1027 = vrot.slane %v36, %v1026
    %v1029 = vsel %vm130, %v1022, 0
    %v1032 = vsel %vm130, %v1023, 0
    %1034 = vmatprep.subr.mxu0 0.0
    %1035 = vmatpush1.msra.mxu0 %v27
    %1036 = vmatprep.subr.mxu0 0.0
    %1037 = vmatpush1.msra.mxu0 %v28
    %1038 = vmatprep.subr.mxu0 0.0
    %1039 = vmatpush1.msra.mxu0 %v29
    %1040 = vmatprep.subr.mxu0 0.0
    %1041 = vmatpush1.msra.mxu0 %v30
    %1042 = vmatprep.subr.mxu0 0.0
    %1043 = vmatpush1.msra.mxu0 0.0
    %1044 = vmatprep.subr.mxu0 0.0
    %1045 = vmatpush1.msra.mxu0 0.0
    %1046 = vmatprep.subr.mxu0 0.0
    %1047 = vmatpush1.msra.mxu0 0.0
    %1048 = vmatprep.subr.mxu0 0.0
    %1049 = vmatpush1.msra.mxu0 0.0
    %1050 = vmatprep.subr.mxu0 0.0
    %1051 = vmatpush1.msra.mxu0 0.0
    %1052 = vmatprep.subr.mxu0 0.0
    %1053 = vmatpush1.msra.mxu0 0.0
    %1054 = vmatprep.subr.mxu0 0.0
    %1055 = vmatpush1.msra.mxu0 0.0
    %1056 = vmatprep.subr.mxu0 0.0
    %1057 = vmatpush1.msra.mxu0 0.0
    %1058 = vmatprep.subr.mxu0 0.0
    %1059 = vmatpush1.msra.mxu0 0.0
    %1060 = vmatprep.subr.mxu0 0.0
    %1061 = vmatpush1.msra.mxu0 0.0
    %1062 = vmatprep.subr.mxu0 0.0
    %1063 = vmatpush1.msra.mxu0 0.0
    %1064 = vmatprep.subr.mxu0 0.0
    %1065 = vmatpush1.msra.mxu0 0.0
    %1066 = vmatprep.subr.mxu0 0.0
    %1067 = vmatpush1.msra.mxu0 0.0
    %1068 = vmatprep.subr.mxu0 0.0
    %1069 = vmatpush1.msra.mxu0 0.0
    %1070 = vmatprep.subr.mxu0 0.0
    %1071 = vmatpush1.msra.mxu0 0.0
    %1072 = vmatprep.subr.mxu0 0.0
    %1073 = vmatpush1.msra.mxu0 0.0
    %1074 = vmatprep.subr.mxu0 0.0
    %1075 = vmatpush1.msra.mxu0 0.0
    %1076 = vmatprep.subr.mxu0 0.0
    %1077 = vmatpush1.msra.mxu0 0.0
    %1078 = vmatprep.subr.mxu0 0.0
    %1079 = vmatpush1.msra.mxu0 0.0
    %1080 = vmatprep.subr.mxu0 0.0
    %1081 = vmatpush1.msra.mxu0 0.0
    %1082 = vmatprep.subr.mxu0 0.0
    %1083 = vmatpush1.msra.mxu0 0.0
    %1084 = vmatprep.subr.mxu0 0.0
    %1085 = vmatpush1.msra.mxu0 0.0
    %1086 = vmatprep.subr.mxu0 0.0
    %1087 = vmatpush1.msra.mxu0 0.0
    %1088 = vmatprep.subr.mxu0 0.0
    %1089 = vmatpush1.msra.mxu0 0.0
    %1090 = vmatprep.subr.mxu0 0.0
    %1091 = vmatpush1.msra.mxu0 0.0
    %1092 = vmatprep.subr.mxu0 0.0
    %1093 = vmatpush1.msra.mxu0 0.0
    %1094 = vmatprep.subr.mxu0 0.0
    %1095 = vmatpush1.msra.mxu0 0.0
    %1096 = vmatprep.subr.mxu0 0.0
    %1097 = vmatpush1.msra.mxu0 0.0
    %1098 = vmatprep.mubr.f32.mxu0 0.0
    %1099 = vmatmul.mubr.f32.gmra.mrb[0].mxu0 %v1029
    %v1100 = vpop.f32.mrb[0].mxu0
    %v1101 = vadd.f32 %v1027, %v1100
    %v1102 = vpop.f32.mrb[0].mxu0
    %1103 = vmatprep.mubr.f32.mxu0 0.0
    %1104 = vmatmul.mubr.f32.gmra.mrb[0].mxu0 %v1032
    %v1105 = vpop.f32.mrb[0].mxu0
    %v1106 = vadd.f32 %v1027, %v1105
    %v1107 = vpop.f32.mrb[0].mxu0
    %1108 = vdwg.mxu0
    %vm1109 = vcmask 48128
    %v1111 = vsel %vm1109, %v38, 0
    %v1114 = vsel %vm1109, %v39, 0
    %vm1116 = vcmask 1045504
    %v1118 = vsel %vm1116, %v35, 0
    %1120 = vmatprep.subr.mxu0 0.0
    %1121 = vmatpush1.msra.mxu0 %v1118
    %1122 = vmatprep.subr.mxu0 0.0
    %1123 = vmatpush1.msra.mxu0 0.0
    %1124 = vmatprep.subr.mxu0 0.0
    %1125 = vmatpush1.msra.mxu0 0.0
    %1126 = vmatprep.subr.mxu0 0.0
    %1127 = vmatpush1.msra.mxu0 0.0
    %1128 = vmatprep.subr.mxu0 0.0
    %1129 = vmatpush1.msra.mxu0 0.0
    %1130 = vmatprep.subr.mxu0 0.0
    %1131 = vmatpush1.msra.mxu0 0.0
    %1132 = vmatprep.subr.mxu0 0.0
    %1133 = vmatpush1.msra.mxu0 0.0
    %1134 = vmatprep.subr.mxu0 0.0
    %1135 = vmatpush1.msra.mxu0 0.0
    %1136 = vmatprep.subr.mxu0 0.0
    %1137 = vmatpush1.msra.mxu0 0.0
    %1138 = vmatprep.subr.mxu0 0.0
    %1139 = vmatpush1.msra.mxu0 0.0
    %1140 = vmatprep.subr.mxu0 0.0
    %1141 = vmatpush1.msra.mxu0 0.0
    %1142 = vmatprep.subr.mxu0 0.0
    %1143 = vmatpush1.msra.mxu0 0.0
    %1144 = vmatprep.subr.mxu0 0.0
    %1145 = vmatpush1.msra.mxu0 0.0
    %1146 = vmatprep.subr.mxu0 0.0
    %1147 = vmatpush1.msra.mxu0 0.0
    %1148 = vmatprep.subr.mxu0 0.0
    %1149 = vmatpush1.msra.mxu0 0.0
    %1150 = vmatprep.subr.mxu0 0.0
    %1151 = vmatpush1.msra.mxu0 0.0
    %1152 = vmatprep.subr.mxu0 0.0
    %1153 = vmatpush1.msra.mxu0 0.0
    %1154 = vmatprep.subr.mxu0 0.0
    %1155 = vmatpush1.msra.mxu0 0.0
    %1156 = vmatprep.subr.mxu0 0.0
    %1157 = vmatpush1.msra.mxu0 0.0
    %1158 = vmatprep.subr.mxu0 0.0
    %1159 = vmatpush1.msra.mxu0 0.0
    %1160 = vmatprep.subr.mxu0 0.0
    %1161 = vmatpush1.msra.mxu0 0.0
    %1162 = vmatprep.subr.mxu0 0.0
    %1163 = vmatpush1.msra.mxu0 0.0
    %1164 = vmatprep.subr.mxu0 0.0
    %1165 = vmatpush1.msra.mxu0 0.0
    %1166 = vmatprep.subr.mxu0 0.0
    %1167 = vmatpush1.msra.mxu0 0.0
    %1168 = vmatprep.subr.mxu0 0.0
    %1169 = vmatpush1.msra.mxu0 0.0
    %1170 = vmatprep.subr.mxu0 0.0
    %1171 = vmatpush1.msra.mxu0 0.0
    %1172 = vmatprep.subr.mxu0 0.0
    %1173 = vmatpush1.msra.mxu0 0.0
    %1174 = vmatprep.subr.mxu0 0.0
    %1175 = vmatpush1.msra.mxu0 0.0
    %1176 = vmatprep.subr.mxu0 0.0
    %1177 = vmatpush1.msra.mxu0 0.0
    %1178 = vmatprep.subr.mxu0 0.0
    %1179 = vmatpush1.msra.mxu0 0.0
    %1180 = vmatprep.subr.mxu0 0.0
    %1181 = vmatpush1.msra.mxu0 0.0
    %1182 = vmatprep.subr.mxu0 0.0
    %1183 = vmatpush1.msra.mxu0 0.0
    %1184 = vmatprep.mubr.f32.mxu0 0.0
    %1185 = vmatmul.mubr.f32.gmra.mrb[0].mxu0 %v1111
    %v1186 = vpop.f32.mrb[0].mxu0
    %v1187 = vadd.f32 %v1101, %v1186
    %v1188 = vpop.f32.mrb[0].mxu0
    %1189 = vmatprep.mubr.f32.mxu0 0.0
    %1190 = vmatmul.mubr.f32.gmra.mrb[0].mxu0 %v1114
    %v1191 = vpop.f32.mrb[0].mxu0
    %v1192 = vadd.f32 %v1106, %v1191
    %v1193 = vpop.f32.mrb[0].mxu0
    %1194 = vdwg.mxu0
    %v1195 = vmul.f32 %v40, %v1187
    %v1196 = vmul.f32 %v41, %v1192
    %v1197 = vsel %vm1109, %v1195, 0.0
    %1198 = vadd.xlane.f32.xlu0 %v1197
    %v1199 = vpop.xlane.xlu0 %1198
    %v1200 = vsel %vm1109, %v1196, 0.0
    %1201 = vadd.xlane.f32.xlu0 %v1200
    %v1202 = vpop.xlane.xlu0 %1201
    %v1203 = vadd.f32 %v1199, %v1202
    %v1204 = vrot.slane %v1203, 4
    %v1205 = vadd.f32 %v1203, %v1204
    %v1206 = vrot.slane %v1205, 2
    %v1207 = vadd.f32 %v1205, %v1206
    %v1208 = vrot.slane %v1207, 1
    %v1209 = vadd.f32 %v1207, %v1208
    %v1210 = vlaneseq
    %v1211 = vshrl.u32 %v1210, 7
    %v1212 = vsub.s32 0, %v1211
    %v1213 = vrot.slane %v37, %v1212
    %v1214 = vmul.f32 %v41, %v1213
    %vm1215 = vcmask 48134
    %v1216 = vsel %vm1215, %v1214, 0.0
    %1217 = vadd.xlane.f32.xlu0 %v1216
    %v1218 = vpop.xlane.xlu0 %1217
    %v1220 = vrot.slane %v1218, 6
    %vm1222 = vcmask 1041408
    %v1223 = vsel %vm1222, %v1220, 0.0
    %v1224 = vrot.slane %v1223, 4
    %v1225 = vadd.f32 %v1223, %v1224
    %v1226 = vrot.slane %v1225, 2
    %v1227 = vadd.f32 %v1225, %v1226
    %v1228 = vrot.slane %v1227, 1
    %v1229 = vadd.f32 %v1227, %v1228
    %v1230 = vadd.f32 %v1209, %v1229
    %v1231 = vlaneseq
    %v1232 = vand.u32 %v1231, 127
    %vm1233 = vcmp.eq.s32.totalorder %v1232, 4
    %v1234 = vsel %vm1233, 0.0, -10000.0
    %v1236 = vrot.slane %v1101, 6
    %v1238 = vrot.slane %v1101, 4
    %v1240 = vrot.slane %v1101, 2
    %v1242 = vsel %vm1222, %v1101, %v1236
    %vm1243 = vcmask 1043456
    %v1244 = vsel %vm1243, %v1242, %v1238
    %v1245 = vsel %vm1116, %v1244, %v1240
    %v1246 = vmul.f32 %v1245, %v33
    %v1247 = vmul.f32 %v1242, %v34
    %v1248 = vsel %vm1109, %v1246, 0.0
    %1249 = vadd.xlane.f32.xlu0 %v1248
    %v1250 = vpop.xlane.xlu0 %1249
    %vm1251 = vcmask 44032
    %v1252 = vsel %vm1251, %v1247, 0.0
    %1253 = vadd.xlane.f32.xlu0 %v1252
    %v1254 = vpop.xlane.xlu0 %1253
    %v1255 = vadd.f32 %v1234, %v31
    %v1256 = vadd.f32 %v1234, %v32
    %v1257 = vadd.f32 %v1255, %v1250
    %v1258 = vadd.f32 %v1256, %v1254
    %v1259 = vsel %vm1109, %v1257, -inf
    %1260 = vmax.xlane.f32.xlu0 %v1259
    %v1261 = vpop.xlane.xlu0 %1260
    %v1262 = vsel %vm1251, %v1258, -inf
    %1263 = vmax.xlane.f32.xlu0 %v1262
    %v1264 = vpop.xlane.xlu0 %1263
    %v1265 = vsub.f32 %v1257, %v1261
    %v1266 = vsub.f32 %v1258, %v1264
    %v1267 = vmul.f32 %v1265, 1.442695
    %v1268 = vpow.pop %v1267
    %v1269 = vmul.f32 %v1266, 1.442695
    %v1270 = vpow.pop %v1269
    %v1271 = vsel %vm1109, %v1268, 0.0
    %1272 = vadd.xlane.f32.xlu0 %v1271
    %v1273 = vpop.xlane.xlu0 %1272
    %v1274 = vsel %vm1251, %v1270, 0.0
    %1275 = vadd.xlane.f32.xlu0 %v1274
    %v1276 = vpop.xlane.xlu0 %1275
    %v1277 = vlog2.pop %v1273
    %v1278 = vmul.f32 %v1277, 0.6931472
    %v1279 = vlog2.pop %v1276
    %v1280 = vmul.f32 %v1279, 0.6931472
    %v1281 = vadd.f32 %v1261, %v1278
    %v1282 = vadd.f32 %v1264, %v1280
    %v1285 = vrot.slane %v1281, 6
    %v1286 = vrot.slane %v1282, 6
    %v1287 = vsel %vm1222, %v1285, %v1286
    %vm1289 = vcmask 7168
    %v1290 = vsel %vm1289, %v1281, %v1287
    %1291 = vxpose.xlu0.b32.start [1/16] %v1290, 128
    %1292 = vxpose.xlu0.b32.cont [2/16] 0.0, 128
    %1293 = vxpose.xlu0.b32.cont [3/16] 0.0, 128
    %1294 = vxpose.xlu0.b32.cont [4/16] 0.0, 128
    %1295 = vxpose.xlu0.b32.cont [5/16] 0.0, 128
    %1296 = vxpose.xlu0.b32.cont [6/16] 0.0, 128
    %1297 = vxpose.xlu0.b32.cont [7/16] 0.0, 128
    %1298 = vxpose.xlu0.b32.cont [8/16] 0.0, 128
    %1299 = vxpose.xlu0.b32.cont [9/16] 0.0, 128
    %1300 = vxpose.xlu0.b32.cont [10/16] 0.0, 128
    %1301 = vxpose.xlu0.b32.cont [11/16] 0.0, 128
    %1302 = vxpose.xlu0.b32.cont [12/16] 0.0, 128
    %1303 = vxpose.xlu0.b32.cont [13/16] 0.0, 128
    %1304 = vxpose.xlu0.b32.cont [14/16] 0.0, 128
    %1305 = vxpose.xlu0.b32.cont [15/16] 0.0, 128
    %1306 = vxpose.xlu0.b32.end [16/16] 0.0, 128
    %v1307 = vpop.trf.xlu0
    %v1308 = vpop.trf.xlu0
    %v1309 = vpop.trf.xlu0
    %v1310 = vpop.trf.xlu0
    %v1311 = vpop.trf.xlu0
    %v1312 = vpop.trf.xlu0
    %v1313 = vpop.trf.xlu0
    %v1314 = vpop.trf.xlu0
    %v1315 = vpop.trf.xlu0
    %v1316 = vpop.trf.xlu0
    %v1317 = vpop.trf.xlu0
    %v1318 = vpop.trf.xlu0
    %v1319 = vpop.trf.xlu0
    %v1320 = vpop.trf.xlu0
    %v1321 = vpop.trf.xlu0
    %v1322 = vpop.trf.xlu0
    %v1323 = vsel %vm1222, %v1240, %v1101
    %v1324 = vsel %vm1243, %v1323, %v1236
    %v1325 = vsel %vm1116, %v1324, %v1238
    %v1326 = vmul.f32 %v1325, %v33
    %v1327 = vmul.f32 %v1323, %v34
    %v1328 = vsel %vm1109, %v1326, 0.0
    %1329 = vadd.xlane.f32.xlu0 %v1328
    %v1330 = vpop.xlane.xlu0 %1329
    %v1331 = vsel %vm1251, %v1327, 0.0
    %1332 = vadd.xlane.f32.xlu0 %v1331
    %v1333 = vpop.xlane.xlu0 %1332
    %v1335 = vrot.slane %v1307, 6
    %v1337 = vrot.slane %v1307, 4
    %v1339 = vrot.slane %v1307, 2
    %v1341 = vsel %vm1222, %v1307, %v1335
    %v1342 = vsel %vm1243, %v1341, %v1337
    %v1343 = vsel %vm1116, %v1342, %v1339
    %v1344 = vadd.f32 %v1343, %v31
    %v1345 = vadd.f32 %v1341, %v32
    %v1346 = vadd.f32 %v1344, %v1330
    %v1347 = vadd.f32 %v1345, %v1333
    %v1348 = vsel %vm1109, %v1346, -inf
    %1349 = vmax.xlane.f32.xlu0 %v1348
    %v1350 = vpop.xlane.xlu0 %1349
    %v1351 = vsel %vm1251, %v1347, -inf
    %1352 = vmax.xlane.f32.xlu0 %v1351
    %v1353 = vpop.xlane.xlu0 %1352
    %v1354 = vsub.f32 %v1346, %v1350
    %v1355 = vsub.f32 %v1347, %v1353
    %v1356 = vmul.f32 %v1354, 1.442695
    %v1357 = vpow.pop %v1356
    %v1358 = vmul.f32 %v1355, 1.442695
    %v1359 = vpow.pop %v1358
    %v1360 = vsel %vm1109, %v1357, 0.0
    %1361 = vadd.xlane.f32.xlu0 %v1360
    %v1362 = vpop.xlane.xlu0 %1361
    %v1363 = vsel %vm1251, %v1359, 0.0
    %1364 = vadd.xlane.f32.xlu0 %v1363
    %v1365 = vpop.xlane.xlu0 %1364
    %v1366 = vlog2.pop %v1362
    %v1367 = vmul.f32 %v1366, 0.6931472
    %v1368 = vlog2.pop %v1365
    %v1369 = vmul.f32 %v1368, 0.6931472
    %v1370 = vadd.f32 %v1350, %v1367
    %v1371 = vadd.f32 %v1353, %v1369
    %v1374 = vrot.slane %v1370, 6
    %v1375 = vrot.slane %v1371, 6
    %v1376 = vsel %vm1222, %v1374, %v1375
    %v1378 = vsel %vm1289, %v1370, %v1376
    %1379 = vxpose.xlu0.b32.start [1/16] %v1378, 128
    %1380 = vxpose.xlu0.b32.cont [2/16] 0.0, 128
    %1381 = vxpose.xlu0.b32.cont [3/16] 0.0, 128
    %1382 = vxpose.xlu0.b32.cont [4/16] 0.0, 128
    %1383 = vxpose.xlu0.b32.cont [5/16] 0.0, 128
    %1384 = vxpose.xlu0.b32.cont [6/16] 0.0, 128
    %1385 = vxpose.xlu0.b32.cont [7/16] 0.0, 128
    %1386 = vxpose.xlu0.b32.cont [8/16] 0.0, 128
    %1387 = vxpose.xlu0.b32.cont [9/16] 0.0, 128
    %1388 = vxpose.xlu0.b32.cont [10/16] 0.0, 128
    %1389 = vxpose.xlu0.b32.cont [11/16] 0.0, 128
    %1390 = vxpose.xlu0.b32.cont [12/16] 0.0, 128
    %1391 = vxpose.xlu0.b32.cont [13/16] 0.0, 128
    %1392 = vxpose.xlu0.b32.cont [14/16] 0.0, 128
    %1393 = vxpose.xlu0.b32.cont [15/16] 0.0, 128
    %1394 = vxpose.xlu0.b32.end [16/16] 0.0, 128
    %v1395 = vpop.trf.xlu0
    %v1396 = vpop.trf.xlu0
    %v1397 = vpop.trf.xlu0
    %v1398 = vpop.trf.xlu0
    %v1399 = vpop.trf.xlu0
    %v1400 = vpop.trf.xlu0
    %v1401 = vpop.trf.xlu0
    %v1402 = vpop.trf.xlu0
    %v1403 = vpop.trf.xlu0
    %v1404 = vpop.trf.xlu0
    %v1405 = vpop.trf.xlu0
    %v1406 = vpop.trf.xlu0
    %v1407 = vpop.trf.xlu0
    %v1408 = vpop.trf.xlu0
    %v1409 = vpop.trf.xlu0
    %v1410 = vpop.trf.xlu0
    %v1411 = vsel %vm1222, %v1238, %v1240
    %v1412 = vsel %vm1243, %v1411, %v1101
    %v1413 = vsel %vm1116, %v1412, %v1236
    %v1414 = vmul.f32 %v1413, %v33
    %v1415 = vmul.f32 %v1411, %v34
    %v1416 = vsel %vm1109, %v1414, 0.0
    %1417 = vadd.xlane.f32.xlu0 %v1416
    %v1418 = vpop.xlane.xlu0 %1417
    %v1419 = vsel %vm1251, %v1415, 0.0
    %1420 = vadd.xlane.f32.xlu0 %v1419
    %v1421 = vpop.xlane.xlu0 %1420
    %v1423 = vrot.slane %v1395, 6
    %v1425 = vrot.slane %v1395, 4
    %v1427 = vrot.slane %v1395, 2
    %v1429 = vsel %vm1222, %v1395, %v1423
    %v1430 = vsel %vm1243, %v1429, %v1425
    %v1431 = vsel %vm1116, %v1430, %v1427
    %v1432 = vadd.f32 %v1431, %v31
    %v1433 = vadd.f32 %v1429, %v32
    %v1434 = vadd.f32 %v1432, %v1418
    %v1435 = vadd.f32 %v1433, %v1421
    %v1436 = vsel %vm1109, %v1434, -inf
    %1437 = vmax.xlane.f32.xlu0 %v1436
    %v1438 = vpop.xlane.xlu0 %1437
    %v1439 = vsel %vm1251, %v1435, -inf
    %1440 = vmax.xlane.f32.xlu0 %v1439
    %v1441 = vpop.xlane.xlu0 %1440
    %v1442 = vsub.f32 %v1434, %v1438
    %v1443 = vsub.f32 %v1435, %v1441
    %v1444 = vmul.f32 %v1442, 1.442695
    %v1445 = vpow.pop %v1444
    %v1446 = vmul.f32 %v1443, 1.442695
    %v1447 = vpow.pop %v1446
    %v1448 = vsel %vm1109, %v1445, 0.0
    %1449 = vadd.xlane.f32.xlu0 %v1448
    %v1450 = vpop.xlane.xlu0 %1449
    %v1451 = vsel %vm1251, %v1447, 0.0
    %1452 = vadd.xlane.f32.xlu0 %v1451
    %v1453 = vpop.xlane.xlu0 %1452
    %v1454 = vlog2.pop %v1450
    %v1455 = vmul.f32 %v1454, 0.6931472
    %v1456 = vlog2.pop %v1453
    %v1457 = vmul.f32 %v1456, 0.6931472
    %v1458 = vadd.f32 %v1438, %v1455
    %v1459 = vadd.f32 %v1441, %v1457
    %v1462 = vrot.slane %v1458, 6
    %v1463 = vrot.slane %v1459, 6
    %v1464 = vsel %vm1222, %v1462, %v1463
    %v1466 = vsel %vm1289, %v1458, %v1464
    %1467 = vxpose.xlu0.b32.start [1/16] %v1466, 128
    %1468 = vxpose.xlu0.b32.cont [2/16] 0.0, 128
    %1469 = vxpose.xlu0.b32.cont [3/16] 0.0, 128
    %1470 = vxpose.xlu0.b32.cont [4/16] 0.0, 128
    %1471 = vxpose.xlu0.b32.cont [5/16] 0.0, 128
    %1472 = vxpose.xlu0.b32.cont [6/16] 0.0, 128
    %1473 = vxpose.xlu0.b32.cont [7/16] 0.0, 128
    %1474 = vxpose.xlu0.b32.cont [8/16] 0.0, 128
    %1475 = vxpose.xlu0.b32.cont [9/16] 0.0, 128
    %1476 = vxpose.xlu0.b32.cont [10/16] 0.0, 128
    %1477 = vxpose.xlu0.b32.cont [11/16] 0.0, 128
    %1478 = vxpose.xlu0.b32.cont [12/16] 0.0, 128
    %1479 = vxpose.xlu0.b32.cont [13/16] 0.0, 128
    %1480 = vxpose.xlu0.b32.cont [14/16] 0.0, 128
    %1481 = vxpose.xlu0.b32.cont [15/16] 0.0, 128
    %1482 = vxpose.xlu0.b32.end [16/16] 0.0, 128
    %v1483 = vpop.trf.xlu0
    %v1484 = vpop.trf.xlu0
    %v1485 = vpop.trf.xlu0
    %v1486 = vpop.trf.xlu0
    %v1487 = vpop.trf.xlu0
    %v1488 = vpop.trf.xlu0
    %v1489 = vpop.trf.xlu0
    %v1490 = vpop.trf.xlu0
    %v1491 = vpop.trf.xlu0
    %v1492 = vpop.trf.xlu0
    %v1493 = vpop.trf.xlu0
    %v1494 = vpop.trf.xlu0
    %v1495 = vpop.trf.xlu0
    %v1496 = vpop.trf.xlu0
    %v1497 = vpop.trf.xlu0
    %v1498 = vpop.trf.xlu0
    %v1499 = vsel %vm1222, %v1236, %v1238
    %v1500 = vsel %vm1243, %v1499, %v1240
    %v1501 = vsel %vm1116, %v1500, %v1101
    %v1502 = vmul.f32 %v1501, %v33
    %v1503 = vmul.f32 %v1499, %v34
    %v1504 = vsel %vm1109, %v1502, 0.0
    %1505 = vadd.xlane.f32.xlu0 %v1504
    %v1506 = vpop.xlane.xlu0 %1505
    %v1507 = vsel %vm1251, %v1503, 0.0
    %1508 = vadd.xlane.f32.xlu0 %v1507
    %v1509 = vpop.xlane.xlu0 %1508
    %v1511 = vrot.slane %v1483, 6
    %v1513 = vrot.slane %v1483, 4
    %v1515 = vrot.slane %v1483, 2
    %v1517 = vsel %vm1222, %v1483, %v1511
    %v1518 = vsel %vm1243, %v1517, %v1513
    %v1519 = vsel %vm1116, %v1518, %v1515
    %v1520 = vadd.f32 %v1519, %v31
    %v1521 = vadd.f32 %v1517, %v32
    %v1522 = vadd.f32 %v1520, %v1506
    %v1523 = vadd.f32 %v1521, %v1509
    %v1524 = vsel %vm1109, %v1522, -inf
    %1525 = vmax.xlane.f32.xlu0 %v1524
    %v1526 = vpop.xlane.xlu0 %1525
    %v1527 = vsel %vm1251, %v1523, -inf
    %1528 = vmax.xlane.f32.xlu0 %v1527
    %v1529 = vpop.xlane.xlu0 %1528
    %v1530 = vsub.f32 %v1522, %v1526
    %v1531 = vsub.f32 %v1523, %v1529
    %v1532 = vmul.f32 %v1530, 1.442695
    %v1533 = vpow.pop %v1532
    %v1534 = vmul.f32 %v1531, 1.442695
    %v1535 = vpow.pop %v1534
    %v1536 = vsel %vm1109, %v1533, 0.0
    %1537 = vadd.xlane.f32.xlu0 %v1536
    %v1538 = vpop.xlane.xlu0 %1537
    %v1539 = vsel %vm1251, %v1535, 0.0
    %1540 = vadd.xlane.f32.xlu0 %v1539
    %v1541 = vpop.xlane.xlu0 %1540
    %v1542 = vlog2.pop %v1538
    %v1543 = vmul.f32 %v1542, 0.6931472
    %v1544 = vlog2.pop %v1541
    %v1545 = vmul.f32 %v1544, 0.6931472
    %v1546 = vadd.f32 %v1526, %v1543
    %v1547 = vadd.f32 %v1529, %v1545
    %v1550 = vrot.slane %v1546, 6
    %v1551 = vrot.slane %v1547, 6
    %v1552 = vsel %vm1222, %v1550, %v1551
    %v1554 = vsel %vm1289, %v1546, %v1552
    %1555 = vxpose.xlu0.b32.start [1/16] %v1554, 128
    %1556 = vxpose.xlu0.b32.cont [2/16] 0.0, 128
    %1557 = vxpose.xlu0.b32.cont [3/16] 0.0, 128
    %1558 = vxpose.xlu0.b32.cont [4/16] 0.0, 128
    %1559 = vxpose.xlu0.b32.cont [5/16] 0.0, 128
    %1560 = vxpose.xlu0.b32.cont [6/16] 0.0, 128
    %1561 = vxpose.xlu0.b32.cont [7/16] 0.0, 128
    %1562 = vxpose.xlu0.b32.cont [8/16] 0.0, 128
    %1563 = vxpose.xlu0.b32.cont [9/16] 0.0, 128
    %1564 = vxpose.xlu0.b32.cont [10/16] 0.0, 128
    %1565 = vxpose.xlu0.b32.cont [11/16] 0.0, 128
    %1566 = vxpose.xlu0.b32.cont [12/16] 0.0, 128
    %1567 = vxpose.xlu0.b32.cont [13/16] 0.0, 128
    %1568 = vxpose.xlu0.b32.cont [14/16] 0.0, 128
    %1569 = vxpose.xlu0.b32.cont [15/16] 0.0, 128
    %1570 = vxpose.xlu0.b32.end [16/16] 0.0, 128
    %v1571 = vpop.trf.xlu0
    %v1572 = vpop.trf.xlu0
    %v1573 = vpop.trf.xlu0
    %v1574 = vpop.trf.xlu0
    %v1575 = vpop.trf.xlu0
    %v1576 = vpop.trf.xlu0
    %v1577 = vpop.trf.xlu0
    %v1578 = vpop.trf.xlu0
    %v1579 = vpop.trf.xlu0
    %v1580 = vpop.trf.xlu0
    %v1581 = vpop.trf.xlu0
    %v1582 = vpop.trf.xlu0
    %v1583 = vpop.trf.xlu0
    %v1584 = vpop.trf.xlu0
    %v1585 = vpop.trf.xlu0
    %v1586 = vpop.trf.xlu0
    %v1588 = vrot.slane %v1106, 6
    %v1590 = vrot.slane %v1106, 4
    %v1592 = vrot.slane %v1106, 2
    %v1594 = vsel %vm1222, %v1106, %v1588
    %v1595 = vsel %vm1243, %v1594, %v1590
    %v1596 = vsel %vm1116, %v1595, %v1592
    %v1597 = vmul.f32 %v1596, %v33
    %v1598 = vmul.f32 %v1594, %v34
    %v1599 = vsel %vm1109, %v1597, 0.0
    %1600 = vadd.xlane.f32.xlu0 %v1599
    %v1601 = vpop.xlane.xlu0 %1600
    %v1602 = vsel %vm1251, %v1598, 0.0
    %1603 = vadd.xlane.f32.xlu0 %v1602
    %v1604 = vpop.xlane.xlu0 %1603
    %v1606 = vrot.slane %v1571, 6
    %v1608 = vrot.slane %v1571, 4
    %v1610 = vrot.slane %v1571, 2
    %v1612 = vsel %vm1222, %v1571, %v1606
    %v1613 = vsel %vm1243, %v1612, %v1608
    %v1614 = vsel %vm1116, %v1613, %v1610
    %v1615 = vadd.f32 %v1614, %v31
    %v1616 = vadd.f32 %v1612, %v32
    %v1617 = vadd.f32 %v1615, %v1601
    %v1618 = vadd.f32 %v1616, %v1604
    %v1619 = vsel %vm1109, %v1617, -inf
    %1620 = vmax.xlane.f32.xlu0 %v1619
    %v1621 = vpop.xlane.xlu0 %1620
    %v1622 = vsel %vm1251, %v1618, -inf
    %1623 = vmax.xlane.f32.xlu0 %v1622
    %v1624 = vpop.xlane.xlu0 %1623
    %v1625 = vsub.f32 %v1617, %v1621
    %v1626 = vsub.f32 %v1618, %v1624
    %v1627 = vmul.f32 %v1625, 1.442695
    %v1628 = vpow.pop %v1627
    %v1629 = vmul.f32 %v1626, 1.442695
    %v1630 = vpow.pop %v1629
    %v1631 = vsel %vm1109, %v1628, 0.0
    %1632 = vadd.xlane.f32.xlu0 %v1631
    %v1633 = vpop.xlane.xlu0 %1632
    %v1634 = vsel %vm1251, %v1630, 0.0
    %1635 = vadd.xlane.f32.xlu0 %v1634
    %v1636 = vpop.xlane.xlu0 %1635
    %v1637 = vlog2.pop %v1633
    %v1638 = vmul.f32 %v1637, 0.6931472
    %v1639 = vlog2.pop %v1636
    %v1640 = vmul.f32 %v1639, 0.6931472
    %v1641 = vadd.f32 %v1621, %v1638
    %v1642 = vadd.f32 %v1624, %v1640
    %v1645 = vrot.slane %v1641, 6
    %v1646 = vrot.slane %v1642, 6
    %v1647 = vsel %vm1222, %v1645, %v1646
    %v1649 = vsel %vm1289, %v1641, %v1647
    %1650 = vxpose.xlu0.b32.start [1/16] %v1649, 128
    %1651 = vxpose.xlu0.b32.cont [2/16] 0.0, 128
    %1652 = vxpose.xlu0.b32.cont [3/16] 0.0, 128
    %1653 = vxpose.xlu0.b32.cont [4/16] 0.0, 128
    %1654 = vxpose.xlu0.b32.cont [5/16] 0.0, 128
    %1655 = vxpose.xlu0.b32.cont [6/16] 0.0, 128
    %1656 = vxpose.xlu0.b32.cont [7/16] 0.0, 128
    %1657 = vxpose.xlu0.b32.cont [8/16] 0.0, 128
    %1658 = vxpose.xlu0.b32.cont [9/16] 0.0, 128
    %1659 = vxpose.xlu0.b32.cont [10/16] 0.0, 128
    %1660 = vxpose.xlu0.b32.cont [11/16] 0.0, 128
    %1661 = vxpose.xlu0.b32.cont [12/16] 0.0, 128
    %1662 = vxpose.xlu0.b32.cont [13/16] 0.0, 128
    %1663 = vxpose.xlu0.b32.cont [14/16] 0.0, 128
    %1664 = vxpose.xlu0.b32.cont [15/16] 0.0, 128
    %1665 = vxpose.xlu0.b32.end [16/16] 0.0, 128
    %v1666 = vpop.trf.xlu0
    %v1667 = vpop.trf.xlu0
    %v1668 = vpop.trf.xlu0
    %v1669 = vpop.trf.xlu0
    %v1670 = vpop.trf.xlu0
    %v1671 = vpop.trf.xlu0
    %v1672 = vpop.trf.xlu0
    %v1673 = vpop.trf.xlu0
    %v1674 = vpop.trf.xlu0
    %v1675 = vpop.trf.xlu0
    %v1676 = vpop.trf.xlu0
    %v1677 = vpop.trf.xlu0
    %v1678 = vpop.trf.xlu0
    %v1679 = vpop.trf.xlu0
    %v1680 = vpop.trf.xlu0
    %v1681 = vpop.trf.xlu0
    %v1682 = vsel %vm1222, %v1592, %v1106
    %v1683 = vsel %vm1243, %v1682, %v1588
    %v1684 = vsel %vm1116, %v1683, %v1590
    %v1685 = vmul.f32 %v1684, %v33
    %v1686 = vmul.f32 %v1682, %v34
    %v1687 = vsel %vm1109, %v1685, 0.0
    %1688 = vadd.xlane.f32.xlu0 %v1687
    %v1689 = vpop.xlane.xlu0 %1688
    %v1690 = vsel %vm1251, %v1686, 0.0
    %1691 = vadd.xlane.f32.xlu0 %v1690
    %v1692 = vpop.xlane.xlu0 %1691
    %v1694 = vrot.slane %v1666, 6
    %v1696 = vrot.slane %v1666, 4
    %v1698 = vrot.slane %v1666, 2
    %v1700 = vsel %vm1222, %v1666, %v1694
    %v1701 = vsel %vm1243, %v1700, %v1696
    %v1702 = vsel %vm1116, %v1701, %v1698
    %v1703 = vadd.f32 %v1702, %v31
    %v1704 = vadd.f32 %v1700, %v32
    %v1705 = vadd.f32 %v1703, %v1689
    %v1706 = vadd.f32 %v1704, %v1692
    %v1707 = vsel %vm1109, %v1705, -inf
    %1708 = vmax.xlane.f32.xlu0 %v1707
    %v1709 = vpop.xlane.xlu0 %1708
    %v1710 = vsel %vm1251, %v1706, -inf
    %1711 = vmax.xlane.f32.xlu0 %v1710
    %v1712 = vpop.xlane.xlu0 %1711
    %v1713 = vsub.f32 %v1705, %v1709
    %v1714 = vsub.f32 %v1706, %v1712
    %v1715 = vmul.f32 %v1713, 1.442695
    %v1716 = vpow.pop %v1715
    %v1717 = vmul.f32 %v1714, 1.442695
    %v1718 = vpow.pop %v1717
    %v1719 = vsel %vm1109, %v1716, 0.0
    %1720 = vadd.xlane.f32.xlu0 %v1719
    %v1721 = vpop.xlane.xlu0 %1720
    %v1722 = vsel %vm1251, %v1718, 0.0
    %1723 = vadd.xlane.f32.xlu0 %v1722
    %v1724 = vpop.xlane.xlu0 %1723
    %v1725 = vlog2.pop %v1721
    %v1726 = vmul.f32 %v1725, 0.6931472
    %v1727 = vlog2.pop %v1724
    %v1728 = vmul.f32 %v1727, 0.6931472
    %v1729 = vadd.f32 %v1709, %v1726
    %v1730 = vadd.f32 %v1712, %v1728
    %v1733 = vrot.slane %v1729, 6
    %v1734 = vrot.slane %v1730, 6
    %v1735 = vsel %vm1222, %v1733, %v1734
    %v1737 = vsel %vm1289, %v1729, %v1735
    %1738 = vxpose.xlu0.b32.start [1/16] %v1737, 128
    %1739 = vxpose.xlu0.b32.cont [2/16] 0.0, 128
    %1740 = vxpose.xlu0.b32.cont [3/16] 0.0, 128
    %1741 = vxpose.xlu0.b32.cont [4/16] 0.0, 128
    %1742 = vxpose.xlu0.b32.cont [5/16] 0.0, 128
    %1743 = vxpose.xlu0.b32.cont [6/16] 0.0, 128
    %1744 = vxpose.xlu0.b32.cont [7/16] 0.0, 128
    %1745 = vxpose.xlu0.b32.cont [8/16] 0.0, 128
    %1746 = vxpose.xlu0.b32.cont [9/16] 0.0, 128
    %1747 = vxpose.xlu0.b32.cont [10/16] 0.0, 128
    %1748 = vxpose.xlu0.b32.cont [11/16] 0.0, 128
    %1749 = vxpose.xlu0.b32.cont [12/16] 0.0, 128
    %1750 = vxpose.xlu0.b32.cont [13/16] 0.0, 128
    %1751 = vxpose.xlu0.b32.cont [14/16] 0.0, 128
    %1752 = vxpose.xlu0.b32.cont [15/16] 0.0, 128
    %1753 = vxpose.xlu0.b32.end [16/16] 0.0, 128
    %v1754 = vpop.trf.xlu0
    %v1755 = vpop.trf.xlu0
    %v1756 = vpop.trf.xlu0
    %v1757 = vpop.trf.xlu0
    %v1758 = vpop.trf.xlu0
    %v1759 = vpop.trf.xlu0
    %v1760 = vpop.trf.xlu0
    %v1761 = vpop.trf.xlu0
    %v1762 = vpop.trf.xlu0
    %v1763 = vpop.trf.xlu0
    %v1764 = vpop.trf.xlu0
    %v1765 = vpop.trf.xlu0
    %v1766 = vpop.trf.xlu0
    %v1767 = vpop.trf.xlu0
    %v1768 = vpop.trf.xlu0
    %v1769 = vpop.trf.xlu0
    %v1770 = vsel %vm1222, %v1590, %v1592
    %v1771 = vsel %vm1243, %v1770, %v1106
    %v1772 = vsel %vm1116, %v1771, %v1588
    %v1773 = vmul.f32 %v1772, %v33
    %v1774 = vmul.f32 %v1770, %v34
    %v1775 = vsel %vm1109, %v1773, 0.0
    %1776 = vadd.xlane.f32.xlu0 %v1775
    %v1777 = vpop.xlane.xlu0 %1776
    %v1778 = vsel %vm1251, %v1774, 0.0
    %1779 = vadd.xlane.f32.xlu0 %v1778
    %v1780 = vpop.xlane.xlu0 %1779
    %v1782 = vrot.slane %v1754, 6
    %v1784 = vrot.slane %v1754, 4
    %v1786 = vrot.slane %v1754, 2
    %v1788 = vsel %vm1222, %v1754, %v1782
    %v1789 = vsel %vm1243, %v1788, %v1784
    %v1790 = vsel %vm1116, %v1789, %v1786
    %v1791 = vadd.f32 %v1790, %v31
    %v1792 = vadd.f32 %v1788, %v32
    %v1793 = vadd.f32 %v1791, %v1777
    %v1794 = vadd.f32 %v1792, %v1780
    %v1795 = vsel %vm1109, %v1793, -inf
    %1796 = vmax.xlane.f32.xlu0 %v1795
    %v1797 = vpop.xlane.xlu0 %1796
    %v1798 = vsel %vm1251, %v1794, -inf
    %1799 = vmax.xlane.f32.xlu0 %v1798
    %v1800 = vpop.xlane.xlu0 %1799
    %v1801 = vsub.f32 %v1793, %v1797
    %v1802 = vsub.f32 %v1794, %v1800
    %v1803 = vmul.f32 %v1801, 1.442695
    %v1804 = vpow.pop %v1803
    %v1805 = vmul.f32 %v1802, 1.442695
    %v1806 = vpow.pop %v1805
    %v1807 = vsel %vm1109, %v1804, 0.0
    %1808 = vadd.xlane.f32.xlu0 %v1807
    %v1809 = vpop.xlane.xlu0 %1808
    %v1810 = vsel %vm1251, %v1806, 0.0
    %1811 = vadd.xlane.f32.xlu0 %v1810
    %v1812 = vpop.xlane.xlu0 %1811
    %v1813 = vlog2.pop %v1809
    %v1814 = vmul.f32 %v1813, 0.6931472
    %v1815 = vlog2.pop %v1812
    %v1816 = vmul.f32 %v1815, 0.6931472
    %v1817 = vadd.f32 %v1797, %v1814
    %v1818 = vadd.f32 %v1800, %v1816
    %v1821 = vrot.slane %v1817, 6
    %v1822 = vrot.slane %v1818, 6
    %v1823 = vsel %vm1222, %v1821, %v1822
    %v1825 = vsel %vm1289, %v1817, %v1823
    %1826 = vxpose.xlu0.b32.start [1/16] %v1825, 128
    %1827 = vxpose.xlu0.b32.cont [2/16] 0.0, 128
    %1828 = vxpose.xlu0.b32.cont [3/16] 0.0, 128
    %1829 = vxpose.xlu0.b32.cont [4/16] 0.0, 128
    %1830 = vxpose.xlu0.b32.cont [5/16] 0.0, 128
    %1831 = vxpose.xlu0.b32.cont [6/16] 0.0, 128
    %1832 = vxpose.xlu0.b32.cont [7/16] 0.0, 128
    %1833 = vxpose.xlu0.b32.cont [8/16] 0.0, 128
    %1834 = vxpose.xlu0.b32.cont [9/16] 0.0, 128
    %1835 = vxpose.xlu0.b32.cont [10/16] 0.0, 128
    %1836 = vxpose.xlu0.b32.cont [11/16] 0.0, 128
    %1837 = vxpose.xlu0.b32.cont [12/16] 0.0, 128
    %1838 = vxpose.xlu0.b32.cont [13/16] 0.0, 128
    %1839 = vxpose.xlu0.b32.cont [14/16] 0.0, 128
    %1840 = vxpose.xlu0.b32.cont [15/16] 0.0, 128
    %1841 = vxpose.xlu0.b32.end [16/16] 0.0, 128
    %v1842 = vpop.trf.xlu0
    %v1843 = vpop.trf.xlu0
    %v1844 = vpop.trf.xlu0
    %v1845 = vpop.trf.xlu0
    %v1846 = vpop.trf.xlu0
    %v1847 = vpop.trf.xlu0
    %v1848 = vpop.trf.xlu0
    %v1849 = vpop.trf.xlu0
    %v1850 = vpop.trf.xlu0
    %v1851 = vpop.trf.xlu0
    %v1852 = vpop.trf.xlu0
    %v1853 = vpop.trf.xlu0
    %v1854 = vpop.trf.xlu0
    %v1855 = vpop.trf.xlu0
    %v1856 = vpop.trf.xlu0
    %v1857 = vpop.trf.xlu0
    %v1858 = vsel %vm1222, %v1588, %v1590
    %v1859 = vsel %vm1243, %v1858, %v1592
    %v1860 = vsel %vm1116, %v1859, %v1106
    %v1861 = vmul.f32 %v1860, %v33
    %v1862 = vmul.f32 %v1858, %v34
    %v1863 = vsel %vm1109, %v1861, 0.0
    %1864 = vadd.xlane.f32.xlu0 %v1863
    %v1865 = vpop.xlane.xlu0 %1864
    %v1866 = vsel %vm1251, %v1862, 0.0
    %1867 = vadd.xlane.f32.xlu0 %v1866
    %v1868 = vpop.xlane.xlu0 %1867
    %v1870 = vrot.slane %v1842, 6
    %v1872 = vrot.slane %v1842, 4
    %v1874 = vrot.slane %v1842, 2
    %v1876 = vsel %vm1222, %v1842, %v1870
    %v1877 = vsel %vm1243, %v1876, %v1872
    %v1878 = vsel %vm1116, %v1877, %v1874
    %v1879 = vadd.f32 %v1878, %v31
    %v1880 = vadd.f32 %v1876, %v32
    %v1881 = vadd.f32 %v1879, %v1865
    %v1882 = vadd.f32 %v1880, %v1868
    %v1883 = vsel %vm1109, %v1881, -inf
    %1884 = vmax.xlane.f32.xlu0 %v1883
    %v1885 = vpop.xlane.xlu0 %1884
    %v1886 = vsel %vm1251, %v1882, -inf
    %1887 = vmax.xlane.f32.xlu0 %v1886
    %v1888 = vpop.xlane.xlu0 %1887
    %v1889 = vsub.f32 %v1881, %v1885
    %v1890 = vsub.f32 %v1882, %v1888
    %v1891 = vmul.f32 %v1889, 1.442695
    %v1892 = vpow.pop %v1891
    %v1893 = vmul.f32 %v1890, 1.442695
    %v1894 = vpow.pop %v1893
    %v1895 = vsel %vm1109, %v1892, 0.0
    %1896 = vadd.xlane.f32.xlu0 %v1895
    %v1897 = vpop.xlane.xlu0 %1896
    %v1898 = vsel %vm1251, %v1894, 0.0
    %1899 = vadd.xlane.f32.xlu0 %v1898
    %v1900 = vpop.xlane.xlu0 %1899
    %v1901 = vlog2.pop %v1897
    %v1902 = vmul.f32 %v1901, 0.6931472
    %v1903 = vlog2.pop %v1900
    %v1904 = vmul.f32 %v1903, 0.6931472
    %v1905 = vadd.f32 %v1885, %v1902
    %v1906 = vadd.f32 %v1888, %v1904
    %v1909 = vrot.slane %v1905, 6
    %v1910 = vrot.slane %v1906, 6
    %v1911 = vsel %vm1222, %v1909, %v1910
    %v1913 = vsel %vm1289, %v1905, %v1911
    %1914 = vxpose.xlu0.b32.start [1/16] %v1913, 128
    %1915 = vxpose.xlu0.b32.cont [2/16] 0.0, 128
    %1916 = vxpose.xlu0.b32.cont [3/16] 0.0, 128
    %1917 = vxpose.xlu0.b32.cont [4/16] 0.0, 128
    %1918 = vxpose.xlu0.b32.cont [5/16] 0.0, 128
    %1919 = vxpose.xlu0.b32.cont [6/16] 0.0, 128
    %1920 = vxpose.xlu0.b32.cont [7/16] 0.0, 128
    %1921 = vxpose.xlu0.b32.cont [8/16] 0.0, 128
    %1922 = vxpose.xlu0.b32.cont [9/16] 0.0, 128
    %1923 = vxpose.xlu0.b32.cont [10/16] 0.0, 128
    %1924 = vxpose.xlu0.b32.cont [11/16] 0.0, 128
    %1925 = vxpose.xlu0.b32.cont [12/16] 0.0, 128
    %1926 = vxpose.xlu0.b32.cont [13/16] 0.0, 128
    %1927 = vxpose.xlu0.b32.cont [14/16] 0.0, 128
    %1928 = vxpose.xlu0.b32.cont [15/16] 0.0, 128
    %1929 = vxpose.xlu0.b32.end [16/16] 0.0, 128
    %v1930 = vpop.trf.xlu0
    %v1931 = vpop.trf.xlu0
    %v1932 = vpop.trf.xlu0
    %v1933 = vpop.trf.xlu0
    %v1934 = vpop.trf.xlu0
    %v1935 = vpop.trf.xlu0
    %v1936 = vpop.trf.xlu0
    %v1937 = vpop.trf.xlu0
    %v1938 = vpop.trf.xlu0
    %v1939 = vpop.trf.xlu0
    %v1940 = vpop.trf.xlu0
    %v1941 = vpop.trf.xlu0
    %v1942 = vpop.trf.xlu0
    %v1943 = vpop.trf.xlu0
    %v1944 = vpop.trf.xlu0
    %v1945 = vpop.trf.xlu0
    %v1946 = vadd.f32 %v1930, %v1213
    %vm1947 = vcmask 41984
    %v1948 = vsel %vm1947, %v1946, -inf
    %1949 = vmax.xlane.f32.xlu0 %v1948
    %v1950 = vpop.xlane.xlu0 %1949
    %v1951 = vsub.f32 %v1946, %v1950
    %v1952 = vmul.f32 %v1951, 1.442695
    %v1953 = vpow.pop %v1952
    %v1954 = vsel %vm1947, %v1953, 0.0
    %1955 = vadd.xlane.f32.xlu0 %v1954
    %v1956 = vpop.xlane.xlu0 %1955
    %v1957 = vlog2.pop %v1956
    %v1958 = vmul.f32 %v1957, 0.6931472
    %v1959 = vadd.f32 %v1950, %v1958
    %v1960 = vsel %vm1222, %v1959, 0.0
    %v1961 = vrot.slane %v1960, 4
    %v1962 = vadd.f32 %v1960, %v1961
    %v1963 = vrot.slane %v1962, 2
    %v1964 = vadd.f32 %v1962, %v1963
    %v1965 = vrot.slane %v1964, 1
    %v1966 = vadd.f32 %v1964, %v1965
    %v1967 = vsub.f32 %v1230, %v1966
    %v1968 = vrcp.pop 2.0
    %v1969 = vmul.f32 %v1967, %v1968
    %vm1970 = vcmask 0
    %1971 = vst.msk [vmem:[#allocation3] sm:$0x1] %vm1970, %v1969
    // Predicated region
    $region18: #{bilstm_crf_forward.1} parent=1 // pred_check
      _
    $region19: #{bilstm_crf_forward.1} parent=1 // pred_check_branch
      %1973 = sbr.rel (0) target = $region21
    $region20: #{bilstm_crf_forward.1} parent=1 // pred_region
      %s1975 = ssub.s32 16, 16
      %1976 = vsyncadd [#allocation4], %s1975
      %s1978 = sshll.u32 [#allocation3], 4
      %s1979 = int_to_ptr.vmem [resolvable:$true] %s1978
      %1981 = dma.vmem_to_hbm [thread:$0]  %s1979, 16, %s4, [#allocation4]
    $region21: #{bilstm_crf_forward.1} parent=1 // pred_fallthru
      _
    // Predicated region
    $region22: #{bilstm_crf_forward.1} parent=1 // pred_check
      _
    $region23: #{bilstm_crf_forward.1} parent=1 // pred_check_branch
      %1983 = sbr.rel (0) target = $region25
    $region24: #{bilstm_crf_forward.1} parent=1 // pred_region
      %1984 = dma.done [#allocation4], 16
    $region25: #{bilstm_crf_forward.1} parent=1 // pred_fallthru
      _
    %1985 = vsyncpa [#allocation4], 1

</llo_original>
